<compile_context>
chip_gen: v6e
topology: v6e:2x2x1
jax: 0.10.0
libtpu: 0.0.40
codegen_flags: <defaults>
</compile_context>

<pallas_src>
import math
import functools

import jax
import jax.numpy as jnp
from jax.experimental import pallas as pl
from jax.experimental.pallas import tpu as pltpu


def _round_up(x, m):
    return (x + m - 1) // m * m


# ----------------------------------------------------------------------------
# Kernel: one grid step == K reverse-diffusion timesteps (model + DDPM update).
# x_t lives in the resident output block (constant out index map), so HBM
# writeback happens exactly once, after the final grid step.
# ----------------------------------------------------------------------------
def ddpm_sampling_kernel(
    coef_ref,      # SMEM  [3, T]          : (c1, c2, sigma) per sampling step
    x0_ref,        # VMEM  [BHp, Wp]       : initial x_T ~ N(0, I)   (padded)
    noise_ref,     # VMEM  [1, K, BHp, Wp] : per-step sampler noise (streamed)
    temb_ref,      # VMEM  [1, K, HIDp]    : per-step time-embedding projection
    cond_b1_ref,   # VMEM  [BHp, HIDp]     : condition @ Wc + b1 (row-broadcast)
    w1_ref,        # VMEM  [Wp, HIDp]  bf16
    w2_ref,        # VMEM  [HIDp, Wp]  bf16
    b2_ref,        # VMEM  [1, Wp]     f32
    out_ref,       # VMEM  [BHp, Wp]       : resident x_t carry / final x_0
    *,
    steps_per_block,
):
    g = pl.program_id(0)

    @pl.when(g == 0)
    def _init():
        out_ref[...] = x0_ref[...]

    # Grid-invariant operands, hoisted out of the unrolled inner loop.
    w1 = w1_ref[...]
    w2 = w2_ref[...]
    b2 = b2_ref[...]
    cond_b1 = cond_b1_ref[...]

    x = out_ref[...]                                        # [BHp, Wp] f32 carry

    for k in range(steps_per_block):                        # static unroll
        s = g * steps_per_block + k                         # global sampling step
        # Scalar coefficient reads from SMEM, issued before any vector work.
        c1 = coef_ref[0, s]
        c2 = coef_ref[1, s]
        sig = coef_ref[2, s]

        # ---- model(x_t, t, cond): conditional 2-layer SiLU MLP over W axis ---
        h1 = jnp.dot(x.astype(jnp.bfloat16), w1,
                     preferred_element_type=jnp.float32)     # [BHp, HIDp]
        h1 = jax.nn.silu(h1 + cond_b1 + temb_ref[0, k][None, :])
        z = jnp.dot(h1.astype(jnp.bfloat16), w2,
                    preferred_element_type=jnp.float32) + b2  # [BHp, Wp]

        # ---- DDPM_Sampler step: x_{t-1} = c1*(x_t - c2*z_t) + sigma*noise ----
        x = c1 * (x - c2 * z) + sig * noise_ref[0, k]

    out_ref[...] = x


# ----------------------------------------------------------------------------
# Wrapper
# ----------------------------------------------------------------------------
def _pick_steps_per_block(num_timesteps):
    for k in (8, 4, 2, 1):
        if num_timesteps % k == 0:
            return k
    return 1


@jax.jit
def ddpm_conditional_sample(x_init, condition, noise_all, temb_all, coefs, params):
    """Runs the full reverse-diffusion sampling loop in a single pallas_call."""
    w1, b1, w2, b2, wt, wc = params
    b, h, w = x_init.shape
    num_timesteps = noise_all.shape[0]
    hid = w1.shape[1]

    bh = b * h
    bhp = _round_up(bh, 8)
    wp = _round_up(w, 128)
    hidp = _round_up(hid, 128)
    k_steps = _pick_steps_per_block(num_timesteps)
    grid = num_timesteps // k_steps

    f32 = jnp.float32
    bf16 = jnp.bfloat16

    # ---- grid-invariant precompute (was recomputed every timestep) ----------
    temb_proj = jnp.dot(temb_all.astype(f32), wt.astype(f32))           # [T, hid]
    temb_proj = jnp.zeros((num_timesteps, hidp), f32).at[:, :hid].set(temb_proj)
    temb_proj = temb_proj.reshape(grid, k_steps, hidp)

    cond_proj = jnp.dot(condition.astype(f32), wc.astype(f32)) + b1     # [b, hid]
    cond_bh = jnp.repeat(cond_proj, h, axis=0)                          # [b*h, hid]
    cond_bh = jnp.zeros((bhp, hidp), f32).at[:bh, :hid].set(cond_bh)

    # ---- lane-dense padded 2-D layouts ---------------------------------------
    x0 = jnp.zeros((bhp, wp), f32).at[:bh, :w].set(x_init.reshape(bh, w))
    # TODO(synk): for large T / data shapes, generate this Gaussian noise inside
    # the kernel (pltpu.prng_seed + pltpu.stateful_normal) instead of streaming it.
    noise = jnp.zeros((num_timesteps, bhp, wp), f32)
    noise = noise.at[:, :bh, :w].set(noise_all.reshape(num_timesteps, bh, w))
    noise = noise.reshape(grid, k_steps, bhp, wp)

    w1p = jnp.zeros((wp, hidp), bf16).at[:w, :hid].set(w1.astype(bf16))
    w2p = jnp.zeros((hidp, wp), bf16).at[:hid, :w].set(w2.astype(bf16))
    b2p = jnp.zeros((1, wp), f32).at[:, :w].set(b2.astype(f32))

    coefs = coefs.astype(f32)                                            # [3, T]

    def _inv(shape):  # grid-invariant, fully-resident VMEM operand
        nd = len(shape)
        return pl.BlockSpec(shape, lambda g, _nd=nd: (0,) * _nd)

    grid_spec = pltpu.PrefetchScalarGridSpec(
        num_scalar_prefetch=0,
        grid=(grid,),
        in_specs=[
            pl.BlockSpec(memory_space=pltpu.MemorySpace.SMEM),           # coefs
            _inv((bhp, wp)),                                             # x0
            pl.BlockSpec((1, k_steps, bhp, wp), lambda g: (g, 0, 0, 0)),  # noise
            pl.BlockSpec((1, k_steps, hidp), lambda g: (g, 0, 0)),        # temb_proj
            _inv((bhp, hidp)),                                           # cond+b1
            _inv((wp, hidp)),                                            # w1 (bf16)
            _inv((hidp, wp)),                                            # w2 (bf16)
            _inv((1, wp)),                                               # b2
        ],
        out_specs=pl.BlockSpec((bhp, wp), lambda g: (0, 0)),             # resident
    )

    # VMEM budget: double-buffered streamed blocks + resident operands + margin.
    est = (2 * (k_steps * bhp * wp * 4 + k_steps * hidp * 4)
           + 2 * bhp * wp * 4          # x0 + out
           + bhp * hidp * 4            # cond_b1
           + 2 * wp * hidp * 2         # bf16 weights
           + wp * 4)                   # b2
    vmem_limit = int(min(100 * 2**20, max(32 * 2**20, 2 * est)))

    out_padded = pl.pallas_call(
        functools.partial(ddpm_sampling_kernel, steps_per_block=k_steps),
        out_shape=jax.ShapeDtypeStruct((bhp, wp), f32),
        grid_spec=grid_spec,
        compiler_params=pltpu.CompilerParams(
            dimension_semantics=("arbitrary",),   # time loop is sequential
            vmem_limit_bytes=vmem_limit,
        ),
    )(coefs, x0, noise, temb_proj, cond_bh, w1p, w2p, b2p)

    return out_padded[:bh, :w].reshape(b, h, w)


# ----------------------------------------------------------------------------
# Schedule / embedding / parameter setup (plain-JAX glue)
# ----------------------------------------------------------------------------
def make_ddpm_coefs(num_timesteps):
    """Linear beta schedule; returns [3, T] coefficients ordered by *sampling step*
    (step s corresponds to timestep t = T-1-s)."""
    betas = jnp.linspace(1e-4, 0.02, num_timesteps, dtype=jnp.float32)
    alphas = 1.0 - betas
    alpha_bars = jnp.cumprod(alphas)
    c1 = 1.0 / jnp.sqrt(alphas)                               # 1/sqrt(alpha_t)
    c2 = betas / jnp.sqrt(1.0 - alpha_bars)                   # beta_t/sqrt(1-abar_t)
    sigma = jnp.sqrt(betas)
    sigma = sigma.at[0].set(0.0)                              # no noise at t == 0
    coefs_t = jnp.stack([c1, c2, sigma], axis=0)              # [3, T] indexed by t
    return coefs_t[:, ::-1]                                   # reorder: index by step


def sinusoidal_time_embedding(num_timesteps, dim):
    """[T, dim] embeddings, ordered by sampling step (t = T-1-s)."""
    half = dim // 2
    t = jnp.arange(num_timesteps - 1, -1, -1, dtype=jnp.float32)   # step-ordered t
    freqs = jnp.exp(-math.log(10000.0) * jnp.arange(half, dtype=jnp.float32) / half)
    args = t[:, None] * freqs[None, :]
    return jnp.concatenate([jnp.sin(args), jnp.cos(args)], axis=-1)


def init_model_params(key, input_dim, loc_dim, hidden, temb_dim):
    k1, k2, k3, k4 = jax.random.split(key, 4)
    w1 = jax.random.normal(k1, (input_dim, hidden), jnp.float32) * (1.0 / math.sqrt(input_dim))
    b1 = jnp.zeros((1, hidden), jnp.float32)
    w2 = jax.random.normal(k2, (hidden, input_dim), jnp.float32) * (1.0 / math.sqrt(hidden))
    b2 = jnp.zeros((1, input_dim), jnp.float32)
    wt = jax.random.normal(k3, (temb_dim, hidden), jnp.float32) * (1.0 / math.sqrt(temb_dim))
    wc = jax.random.normal(k4, (loc_dim, hidden), jnp.float32) * (1.0 / math.sqrt(loc_dim))
    return (w1, b1, w2, b2, wt, wc)


# ----------------------------------------------------------------------------
if __name__ == "__main__":
    # Small deterministic configuration.
    B, H, W = 2, 16, 16            # data_shape = (b, h, w); input_dim == W
    LOC_DIM = 7
    HIDDEN = 32
    TEMB_DIM = 32
    NUM_TIMESTEPS = 16             # small T for the demo (module default is 1000)

    key = jax.random.PRNGKey(0)
    k_x, k_cond, k_noise, k_params = jax.random.split(key, 4)

    x_init = jax.random.normal(k_x, (B, H, W), jnp.float32)          # x_T ~ N(0, I)
    condition = jax.random.normal(k_cond, (B, LOC_DIM), jnp.float32)
    noise_all = jax.random.normal(k_noise, (NUM_TIMESTEPS, B, H, W), jnp.float32)
    temb_all = sinusoidal_time_embedding(NUM_TIMESTEPS, TEMB_DIM)
    coefs = make_ddpm_coefs(NUM_TIMESTEPS)
    params = init_model_params(k_params, W, LOC_DIM, HIDDEN, TEMB_DIM)

    x0 = ddpm_conditional_sample(x_init, condition, noise_all, temb_all, coefs, params)
    x0 = jax.block_until_ready(x0)

    assert x0.shape == (B, H, W) and x0.dtype == jnp.float32
    assert bool(jnp.all(jnp.isfinite(x0)))
    print("KERNEL_OK")
</pallas_src>

<mosaic_0001>
module attributes {stable_mosaic.version = 11 : i64} {
  func.func @ddpm_sampling_kernel(%arg0: i32, %arg1: memref<3x16xf32, #tpu.memory_space<smem>>, %arg2: memref<32x128xf32, #tpu.memory_space<vmem>>, %arg3: memref<1x8x32x128xf32, #tpu.memory_space<vmem>>, %arg4: memref<1x8x128xf32, #tpu.memory_space<vmem>>, %arg5: memref<32x128xf32, #tpu.memory_space<vmem>>, %arg6: memref<128x128xbf16, #tpu.memory_space<vmem>>, %arg7: memref<128x128xbf16, #tpu.memory_space<vmem>>, %arg8: memref<1x128xf32, #tpu.memory_space<vmem>>, %arg9: memref<32x128xf32, #tpu.memory_space<vmem>>) attributes {dimension_semantics = [#tpu.dimension_semantics<arbitrary>], iteration_bounds = array<i64: 2>, scalar_prefetch = 0 : i64, scratch_operands = 0 : i64, tpu.core_type = #tpu.core_type<tc>, window_params = [{transform_indices = @transform_0, window_bounds = array<i64: 3, 16>}, {pipeline_mode = #tpu.pipeline_mode<synchronous>, transform_indices = @transform_1, window_bounds = array<i64: 32, 128>}, {transform_indices = @transform_2, window_bounds = array<i64: 1, 8, 32, 128>}, {transform_indices = @transform_3, window_bounds = array<i64: 1, 8, 128>}, {pipeline_mode = #tpu.pipeline_mode<synchronous>, transform_indices = @transform_4, window_bounds = array<i64: 32, 128>}, {pipeline_mode = #tpu.pipeline_mode<synchronous>, transform_indices = @transform_5, window_bounds = array<i64: 128, 128>}, {pipeline_mode = #tpu.pipeline_mode<synchronous>, transform_indices = @transform_6, window_bounds = array<i64: 128, 128>}, {pipeline_mode = #tpu.pipeline_mode<synchronous>, transform_indices = @transform_7, window_bounds = array<i64: 1, 128>}, {pipeline_mode = #tpu.pipeline_mode<synchronous>, transform_indices = @transform_8, window_bounds = array<i64: 32, 128>}]} {
    %c0_i32 = arith.constant 0 : i32
    %0 = arith.cmpi eq, %arg0, %c0_i32 : i32
    %1 = arith.extui %0 : i1 to i32
    %c0_i32_0 = arith.constant 0 : i32
    %2 = arith.cmpi ne, %1, %c0_i32_0 : i32
    scf.if %2 {
      %c0_116 = arith.constant 0 : index
      %c0_117 = arith.constant 0 : index
      %297 = vector.load %arg2[%c0_116, %c0_117] : memref<32x128xf32, #tpu.memory_space<vmem>>, vector<32x128xf32>
      %c0_118 = arith.constant 0 : index
      %c0_119 = arith.constant 0 : index
      %298 = vector.load %arg9[%c0_118, %c0_119] : memref<32x128xf32, #tpu.memory_space<vmem>>, vector<32x128xf32>
      tpu.vector_store %arg9[%c0_118, %c0_119], %297 {strides = array<i32>} : memref<32x128xf32, #tpu.memory_space<vmem>>, vector<32x128xf32>,
    } else {
    }
    %c0 = arith.constant 0 : index
    %c0_1 = arith.constant 0 : index
    %3 = vector.load %arg6[%c0, %c0_1] : memref<128x128xbf16, #tpu.memory_space<vmem>>, vector<128x128xbf16>
    %c0_2 = arith.constant 0 : index
    %c0_3 = arith.constant 0 : index
    %4 = vector.load %arg7[%c0_2, %c0_3] : memref<128x128xbf16, #tpu.memory_space<vmem>>, vector<128x128xbf16>
    %c0_4 = arith.constant 0 : index
    %c0_5 = arith.constant 0 : index
    %5 = vector.load %arg8[%c0_4, %c0_5] : memref<1x128xf32, #tpu.memory_space<vmem>>, vector<1x128xf32>
    %c0_6 = arith.constant 0 : index
    %c0_7 = arith.constant 0 : index
    %6 = vector.load %arg5[%c0_6, %c0_7] : memref<32x128xf32, #tpu.memory_space<vmem>>, vector<32x128xf32>
    %c0_8 = arith.constant 0 : index
    %c0_9 = arith.constant 0 : index
    %7 = vector.load %arg9[%c0_8, %c0_9] : memref<32x128xf32, #tpu.memory_space<vmem>>, vector<32x128xf32>
    %c8_i32 = arith.constant 8 : i32
    %8 = arith.muli %arg0, %c8_i32 : i32
    %c0_i32_10 = arith.constant 0 : i32
    %9 = arith.addi %8, %c0_i32_10 : i32
    %c0_11 = arith.constant 0 : index
    %10 = arith.index_cast %9 : i32 to index
    %11 = memref.load %arg1[%c0_11, %10] : memref<3x16xf32, #tpu.memory_space<smem>>
    %c1 = arith.constant 1 : index
    %12 = arith.index_cast %9 : i32 to index
    %13 = memref.load %arg1[%c1, %12] : memref<3x16xf32, #tpu.memory_space<smem>>
    %c2 = arith.constant 2 : index
    %14 = arith.index_cast %9 : i32 to index
    %15 = memref.load %arg1[%c2, %14] : memref<3x16xf32, #tpu.memory_space<smem>>
    %16 = arith.truncf %7 : vector<32x128xf32> to vector<32x128xbf16>
    %cst = arith.constant dense<0.000000e+00> : vector<32x128xf32>
    %17 = tpu.matmul %16, %3, %cst {dimension_numbers = #tpu.dot_dimension_numbers<[1], [0], [0], [1], [0, 0, 1, 1], [], []>} : vector<32x128xbf16>, vector<128x128xbf16>, vector<32x128xf32> -> vector<32x128xf32>
    %18 = arith.addf %17, %6 : vector<32x128xf32>
    %c0_12 = arith.constant 0 : index
    %c0_13 = arith.constant 0 : index
    %c0_14 = arith.constant 0 : index
    %19 = vector.load %arg4[%c0_12, %c0_13, %c0_14] : memref<1x8x128xf32, #tpu.memory_space<vmem>>, vector<1x1x128xf32>
    %20 = vector.shape_cast %19 : vector<1x1x128xf32> to vector<128xf32>
    %21 = vector.shape_cast %20 : vector<128xf32> to vector<1x128xf32>
    %22 = vector.broadcast %21 : vector<1x128xf32> to vector<32x128xf32>
    %23 = arith.addf %18, %22 : vector<32x128xf32>
    %24 = arith.negf %23 : vector<32x128xf32>
    %25 = math.exp %24 : vector<32x128xf32>
    %cst_15 = arith.constant 1.000000e+00 : f32
    %26 = vector.broadcast %cst_15 : f32 to vector<32x128xf32>
    %27 = arith.addf %26, %25 : vector<32x128xf32>
    %28 = arith.divf %26, %27 : vector<32x128xf32>
    %29 = arith.mulf %23, %28 : vector<32x128xf32>
    %30 = arith.truncf %29 : vector<32x128xf32> to vector<32x128xbf16>
    %cst_16 = arith.constant dense<0.000000e+00> : vector<32x128xf32>
    %31 = tpu.matmul %30, %4, %cst_16 {dimension_numbers = #tpu.dot_dimension_numbers<[1], [0], [0], [1], [0, 0, 1, 1], [], []>} : vector<32x128xbf16>, vector<128x128xbf16>, vector<32x128xf32> -> vector<32x128xf32>
    %32 = vector.broadcast %5 : vector<1x128xf32> to vector<32x128xf32>
    %33 = arith.addf %31, %32 : vector<32x128xf32>
    %34 = vector.broadcast %13 : f32 to vector<32x128xf32>
    %35 = arith.mulf %34, %33 : vector<32x128xf32>
    %36 = arith.subf %7, %35 : vector<32x128xf32>
    %37 = vector.broadcast %11 : f32 to vector<32x128xf32>
    %38 = arith.mulf %37, %36 : vector<32x128xf32>
    %c0_17 = arith.constant 0 : index
    %c0_18 = arith.constant 0 : index
    %c0_19 = arith.constant 0 : index
    %c0_20 = arith.constant 0 : index
    %39 = vector.load %arg3[%c0_17, %c0_18, %c0_19, %c0_20] : memref<1x8x32x128xf32, #tpu.memory_space<vmem>>, vector<1x1x32x128xf32>
    %40 = vector.shape_cast %39 : vector<1x1x32x128xf32> to vector<32x128xf32>
    %41 = vector.broadcast %15 : f32 to vector<32x128xf32>
    %42 = arith.mulf %41, %40 : vector<32x128xf32>
    %43 = arith.addf %38, %42 : vector<32x128xf32>
    %c8_i32_21 = arith.constant 8 : i32
    %44 = arith.muli %arg0, %c8_i32_21 : i32
    %c1_i32 = arith.constant 1 : i32
    %45 = arith.addi %44, %c1_i32 : i32
    %c0_22 = arith.constant 0 : index
    %46 = arith.index_cast %45 : i32 to index
    %47 = memref.load %arg1[%c0_22, %46] : memref<3x16xf32, #tpu.memory_space<smem>>
    %c1_23 = arith.constant 1 : index
    %48 = arith.index_cast %45 : i32 to index
    %49 = memref.load %arg1[%c1_23, %48] : memref<3x16xf32, #tpu.memory_space<smem>>
    %c2_24 = arith.constant 2 : index
    %50 = arith.index_cast %45 : i32 to index
    %51 = memref.load %arg1[%c2_24, %50] : memref<3x16xf32, #tpu.memory_space<smem>>
    %52 = arith.truncf %43 : vector<32x128xf32> to vector<32x128xbf16>
    %cst_25 = arith.constant dense<0.000000e+00> : vector<32x128xf32>
    %53 = tpu.matmul %52, %3, %cst_25 {dimension_numbers = #tpu.dot_dimension_numbers<[1], [0], [0], [1], [0, 0, 1, 1], [], []>} : vector<32x128xbf16>, vector<128x128xbf16>, vector<32x128xf32> -> vector<32x128xf32>
    %54 = arith.addf %53, %6 : vector<32x128xf32>
    %c0_26 = arith.constant 0 : index
    %c1_27 = arith.constant 1 : index
    %c0_28 = arith.constant 0 : index
    %55 = vector.load %arg4[%c0_26, %c1_27, %c0_28] : memref<1x8x128xf32, #tpu.memory_space<vmem>>, vector<1x1x128xf32>
    %56 = vector.shape_cast %55 : vector<1x1x128xf32> to vector<128xf32>
    %57 = vector.shape_cast %56 : vector<128xf32> to vector<1x128xf32>
    %58 = vector.broadcast %57 : vector<1x128xf32> to vector<32x128xf32>
    %59 = arith.addf %54, %58 : vector<32x128xf32>
    %60 = arith.negf %59 : vector<32x128xf32>
    %61 = math.exp %60 : vector<32x128xf32>
    %cst_29 = arith.constant 1.000000e+00 : f32
    %62 = vector.broadcast %cst_29 : f32 to vector<32x128xf32>
    %63 = arith.addf %62, %61 : vector<32x128xf32>
    %64 = arith.divf %62, %63 : vector<32x128xf32>
    %65 = arith.mulf %59, %64 : vector<32x128xf32>
    %66 = arith.truncf %65 : vector<32x128xf32> to vector<32x128xbf16>
    %cst_30 = arith.constant dense<0.000000e+00> : vector<32x128xf32>
    %67 = tpu.matmul %66, %4, %cst_30 {dimension_numbers = #tpu.dot_dimension_numbers<[1], [0], [0], [1], [0, 0, 1, 1], [], []>} : vector<32x128xbf16>, vector<128x128xbf16>, vector<32x128xf32> -> vector<32x128xf32>
    %68 = vector.broadcast %5 : vector<1x128xf32> to vector<32x128xf32>
    %69 = arith.addf %67, %68 : vector<32x128xf32>
    %70 = vector.broadcast %49 : f32 to vector<32x128xf32>
    %71 = arith.mulf %70, %69 : vector<32x128xf32>
    %72 = arith.subf %43, %71 : vector<32x128xf32>
    %73 = vector.broadcast %47 : f32 to vector<32x128xf32>
    %74 = arith.mulf %73, %72 : vector<32x128xf32>
    %c0_31 = arith.constant 0 : index
    %c1_32 = arith.constant 1 : index
    %c0_33 = arith.constant 0 : index
    %c0_34 = arith.constant 0 : index
    %75 = vector.load %arg3[%c0_31, %c1_32, %c0_33, %c0_34] : memref<1x8x32x128xf32, #tpu.memory_space<vmem>>, vector<1x1x32x128xf32>
    %76 = vector.shape_cast %75 : vector<1x1x32x128xf32> to vector<32x128xf32>
    %77 = vector.broadcast %51 : f32 to vector<32x128xf32>
    %78 = arith.mulf %77, %76 : vector<32x128xf32>
    %79 = arith.addf %74, %78 : vector<32x128xf32>
    %c8_i32_35 = arith.constant 8 : i32
    %80 = arith.muli %arg0, %c8_i32_35 : i32
    %c2_i32 = arith.constant 2 : i32
    %81 = arith.addi %80, %c2_i32 : i32
    %c0_36 = arith.constant 0 : index
    %82 = arith.index_cast %81 : i32 to index
    %83 = memref.load %arg1[%c0_36, %82] : memref<3x16xf32, #tpu.memory_space<smem>>
    %c1_37 = arith.constant 1 : index
    %84 = arith.index_cast %81 : i32 to index
    %85 = memref.load %arg1[%c1_37, %84] : memref<3x16xf32, #tpu.memory_space<smem>>
    %c2_38 = arith.constant 2 : index
    %86 = arith.index_cast %81 : i32 to index
    %87 = memref.load %arg1[%c2_38, %86] : memref<3x16xf32, #tpu.memory_space<smem>>
    %88 = arith.truncf %79 : vector<32x128xf32> to vector<32x128xbf16>
    %cst_39 = arith.constant dense<0.000000e+00> : vector<32x128xf32>
    %89 = tpu.matmul %88, %3, %cst_39 {dimension_numbers = #tpu.dot_dimension_numbers<[1], [0], [0], [1], [0, 0, 1, 1], [], []>} : vector<32x128xbf16>, vector<128x128xbf16>, vector<32x128xf32> -> vector<32x128xf32>
    %90 = arith.addf %89, %6 : vector<32x128xf32>
    %c0_40 = arith.constant 0 : index
    %c2_41 = arith.constant 2 : index
    %c0_42 = arith.constant 0 : index
    %91 = vector.load %arg4[%c0_40, %c2_41, %c0_42] : memref<1x8x128xf32, #tpu.memory_space<vmem>>, vector<1x1x128xf32>
    %92 = vector.shape_cast %91 : vector<1x1x128xf32> to vector<128xf32>
    %93 = vector.shape_cast %92 : vector<128xf32> to vector<1x128xf32>
    %94 = vector.broadcast %93 : vector<1x128xf32> to vector<32x128xf32>
    %95 = arith.addf %90, %94 : vector<32x128xf32>
    %96 = arith.negf %95 : vector<32x128xf32>
    %97 = math.exp %96 : vector<32x128xf32>
    %cst_43 = arith.constant 1.000000e+00 : f32
    %98 = vector.broadcast %cst_43 : f32 to vector<32x128xf32>
    %99 = arith.addf %98, %97 : vector<32x128xf32>
    %100 = arith.divf %98, %99 : vector<32x128xf32>
    %101 = arith.mulf %95, %100 : vector<32x128xf32>
    %102 = arith.truncf %101 : vector<32x128xf32> to vector<32x128xbf16>
    %cst_44 = arith.constant dense<0.000000e+00> : vector<32x128xf32>
    %103 = tpu.matmul %102, %4, %cst_44 {dimension_numbers = #tpu.dot_dimension_numbers<[1], [0], [0], [1], [0, 0, 1, 1], [], []>} : vector<32x128xbf16>, vector<128x128xbf16>, vector<32x128xf32> -> vector<32x128xf32>
    %104 = vector.broadcast %5 : vector<1x128xf32> to vector<32x128xf32>
    %105 = arith.addf %103, %104 : vector<32x128xf32>
    %106 = vector.broadcast %85 : f32 to vector<32x128xf32>
    %107 = arith.mulf %106, %105 : vector<32x128xf32>
    %108 = arith.subf %79, %107 : vector<32x128xf32>
    %109 = vector.broadcast %83 : f32 to vector<32x128xf32>
    %110 = arith.mulf %109, %108 : vector<32x128xf32>
    %c0_45 = arith.constant 0 : index
    %c2_46 = arith.constant 2 : index
    %c0_47 = arith.constant 0 : index
    %c0_48 = arith.constant 0 : index
    %111 = vector.load %arg3[%c0_45, %c2_46, %c0_47, %c0_48] : memref<1x8x32x128xf32, #tpu.memory_space<vmem>>, vector<1x1x32x128xf32>
    %112 = vector.shape_cast %111 : vector<1x1x32x128xf32> to vector<32x128xf32>
    %113 = vector.broadcast %87 : f32 to vector<32x128xf32>
    %114 = arith.mulf %113, %112 : vector<32x128xf32>
    %115 = arith.addf %110, %114 : vector<32x128xf32>
    %c8_i32_49 = arith.constant 8 : i32
    %116 = arith.muli %arg0, %c8_i32_49 : i32
    %c3_i32 = arith.constant 3 : i32
    %117 = arith.addi %116, %c3_i32 : i32
    %c0_50 = arith.constant 0 : index
    %118 = arith.index_cast %117 : i32 to index
    %119 = memref.load %arg1[%c0_50, %118] : memref<3x16xf32, #tpu.memory_space<smem>>
    %c1_51 = arith.constant 1 : index
    %120 = arith.index_cast %117 : i32 to index
    %121 = memref.load %arg1[%c1_51, %120] : memref<3x16xf32, #tpu.memory_space<smem>>
    %c2_52 = arith.constant 2 : index
    %122 = arith.index_cast %117 : i32 to index
    %123 = memref.load %arg1[%c2_52, %122] : memref<3x16xf32, #tpu.memory_space<smem>>
    %124 = arith.truncf %115 : vector<32x128xf32> to vector<32x128xbf16>
    %cst_53 = arith.constant dense<0.000000e+00> : vector<32x128xf32>
    %125 = tpu.matmul %124, %3, %cst_53 {dimension_numbers = #tpu.dot_dimension_numbers<[1], [0], [0], [1], [0, 0, 1, 1], [], []>} : vector<32x128xbf16>, vector<128x128xbf16>, vector<32x128xf32> -> vector<32x128xf32>
    %126 = arith.addf %125, %6 : vector<32x128xf32>
    %c0_54 = arith.constant 0 : index
    %c3 = arith.constant 3 : index
    %c0_55 = arith.constant 0 : index
    %127 = vector.load %arg4[%c0_54, %c3, %c0_55] : memref<1x8x128xf32, #tpu.memory_space<vmem>>, vector<1x1x128xf32>
    %128 = vector.shape_cast %127 : vector<1x1x128xf32> to vector<128xf32>
    %129 = vector.shape_cast %128 : vector<128xf32> to vector<1x128xf32>
    %130 = vector.broadcast %129 : vector<1x128xf32> to vector<32x128xf32>
    %131 = arith.addf %126, %130 : vector<32x128xf32>
    %132 = arith.negf %131 : vector<32x128xf32>
    %133 = math.exp %132 : vector<32x128xf32>
    %cst_56 = arith.constant 1.000000e+00 : f32
    %134 = vector.broadcast %cst_56 : f32 to vector<32x128xf32>
    %135 = arith.addf %134, %133 : vector<32x128xf32>
    %136 = arith.divf %134, %135 : vector<32x128xf32>
    %137 = arith.mulf %131, %136 : vector<32x128xf32>
    %138 = arith.truncf %137 : vector<32x128xf32> to vector<32x128xbf16>
    %cst_57 = arith.constant dense<0.000000e+00> : vector<32x128xf32>
    %139 = tpu.matmul %138, %4, %cst_57 {dimension_numbers = #tpu.dot_dimension_numbers<[1], [0], [0], [1], [0, 0, 1, 1], [], []>} : vector<32x128xbf16>, vector<128x128xbf16>, vector<32x128xf32> -> vector<32x128xf32>
    %140 = vector.broadcast %5 : vector<1x128xf32> to vector<32x128xf32>
    %141 = arith.addf %139, %140 : vector<32x128xf32>
    %142 = vector.broadcast %121 : f32 to vector<32x128xf32>
    %143 = arith.mulf %142, %141 : vector<32x128xf32>
    %144 = arith.subf %115, %143 : vector<32x128xf32>
    %145 = vector.broadcast %119 : f32 to vector<32x128xf32>
    %146 = arith.mulf %145, %144 : vector<32x128xf32>
    %c0_58 = arith.constant 0 : index
    %c3_59 = arith.constant 3 : index
    %c0_60 = arith.constant 0 : index
    %c0_61 = arith.constant 0 : index
    %147 = vector.load %arg3[%c0_58, %c3_59, %c0_60, %c0_61] : memref<1x8x32x128xf32, #tpu.memory_space<vmem>>, vector<1x1x32x128xf32>
    %148 = vector.shape_cast %147 : vector<1x1x32x128xf32> to vector<32x128xf32>
    %149 = vector.broadcast %123 : f32 to vector<32x128xf32>
    %150 = arith.mulf %149, %148 : vector<32x128xf32>
    %151 = arith.addf %146, %150 : vector<32x128xf32>
    %c8_i32_62 = arith.constant 8 : i32
    %152 = arith.muli %arg0, %c8_i32_62 : i32
    %c4_i32 = arith.constant 4 : i32
    %153 = arith.addi %152, %c4_i32 : i32
    %c0_63 = arith.constant 0 : index
    %154 = arith.index_cast %153 : i32 to index
    %155 = memref.load %arg1[%c0_63, %154] : memref<3x16xf32, #tpu.memory_space<smem>>
    %c1_64 = arith.constant 1 : index
    %156 = arith.index_cast %153 : i32 to index
    %157 = memref.load %arg1[%c1_64, %156] : memref<3x16xf32, #tpu.memory_space<smem>>
    %c2_65 = arith.constant 2 : index
    %158 = arith.index_cast %153 : i32 to index
    %159 = memref.load %arg1[%c2_65, %158] : memref<3x16xf32, #tpu.memory_space<smem>>
    %160 = arith.truncf %151 : vector<32x128xf32> to vector<32x128xbf16>
    %cst_66 = arith.constant dense<0.000000e+00> : vector<32x128xf32>
    %161 = tpu.matmul %160, %3, %cst_66 {dimension_numbers = #tpu.dot_dimension_numbers<[1], [0], [0], [1], [0, 0, 1, 1], [], []>} : vector<32x128xbf16>, vector<128x128xbf16>, vector<32x128xf32> -> vector<32x128xf32>
    %162 = arith.addf %161, %6 : vector<32x128xf32>
    %c0_67 = arith.constant 0 : index
    %c4 = arith.constant 4 : index
    %c0_68 = arith.constant 0 : index
    %163 = vector.load %arg4[%c0_67, %c4, %c0_68] : memref<1x8x128xf32, #tpu.memory_space<vmem>>, vector<1x1x128xf32>
    %164 = vector.shape_cast %163 : vector<1x1x128xf32> to vector<128xf32>
    %165 = vector.shape_cast %164 : vector<128xf32> to vector<1x128xf32>
    %166 = vector.broadcast %165 : vector<1x128xf32> to vector<32x128xf32>
    %167 = arith.addf %162, %166 : vector<32x128xf32>
    %168 = arith.negf %167 : vector<32x128xf32>
    %169 = math.exp %168 : vector<32x128xf32>
    %cst_69 = arith.constant 1.000000e+00 : f32
    %170 = vector.broadcast %cst_69 : f32 to vector<32x128xf32>
    %171 = arith.addf %170, %169 : vector<32x128xf32>
    %172 = arith.divf %170, %171 : vector<32x128xf32>
    %173 = arith.mulf %167, %172 : vector<32x128xf32>
    %174 = arith.truncf %173 : vector<32x128xf32> to vector<32x128xbf16>
    %cst_70 = arith.constant dense<0.000000e+00> : vector<32x128xf32>
    %175 = tpu.matmul %174, %4, %cst_70 {dimension_numbers = #tpu.dot_dimension_numbers<[1], [0], [0], [1], [0, 0, 1, 1], [], []>} : vector<32x128xbf16>, vector<128x128xbf16>, vector<32x128xf32> -> vector<32x128xf32>
    %176 = vector.broadcast %5 : vector<1x128xf32> to vector<32x128xf32>
    %177 = arith.addf %175, %176 : vector<32x128xf32>
    %178 = vector.broadcast %157 : f32 to vector<32x128xf32>
    %179 = arith.mulf %178, %177 : vector<32x128xf32>
    %180 = arith.subf %151, %179 : vector<32x128xf32>
    %181 = vector.broadcast %155 : f32 to vector<32x128xf32>
    %182 = arith.mulf %181, %180 : vector<32x128xf32>
    %c0_71 = arith.constant 0 : index
    %c4_72 = arith.constant 4 : index
    %c0_73 = arith.constant 0 : index
    %c0_74 = arith.constant 0 : index
    %183 = vector.load %arg3[%c0_71, %c4_72, %c0_73, %c0_74] : memref<1x8x32x128xf32, #tpu.memory_space<vmem>>, vector<1x1x32x128xf32>
    %184 = vector.shape_cast %183 : vector<1x1x32x128xf32> to vector<32x128xf32>
    %185 = vector.broadcast %159 : f32 to vector<32x128xf32>
    %186 = arith.mulf %185, %184 : vector<32x128xf32>
    %187 = arith.addf %182, %186 : vector<32x128xf32>
    %c8_i32_75 = arith.constant 8 : i32
    %188 = arith.muli %arg0, %c8_i32_75 : i32
    %c5_i32 = arith.constant 5 : i32
    %189 = arith.addi %188, %c5_i32 : i32
    %c0_76 = arith.constant 0 : index
    %190 = arith.index_cast %189 : i32 to index
    %191 = memref.load %arg1[%c0_76, %190] : memref<3x16xf32, #tpu.memory_space<smem>>
    %c1_77 = arith.constant 1 : index
    %192 = arith.index_cast %189 : i32 to index
    %193 = memref.load %arg1[%c1_77, %192] : memref<3x16xf32, #tpu.memory_space<smem>>
    %c2_78 = arith.constant 2 : index
    %194 = arith.index_cast %189 : i32 to index
    %195 = memref.load %arg1[%c2_78, %194] : memref<3x16xf32, #tpu.memory_space<smem>>
    %196 = arith.truncf %187 : vector<32x128xf32> to vector<32x128xbf16>
    %cst_79 = arith.constant dense<0.000000e+00> : vector<32x128xf32>
    %197 = tpu.matmul %196, %3, %cst_79 {dimension_numbers = #tpu.dot_dimension_numbers<[1], [0], [0], [1], [0, 0, 1, 1], [], []>} : vector<32x128xbf16>, vector<128x128xbf16>, vector<32x128xf32> -> vector<32x128xf32>
    %198 = arith.addf %197, %6 : vector<32x128xf32>
    %c0_80 = arith.constant 0 : index
    %c5 = arith.constant 5 : index
    %c0_81 = arith.constant 0 : index
    %199 = vector.load %arg4[%c0_80, %c5, %c0_81] : memref<1x8x128xf32, #tpu.memory_space<vmem>>, vector<1x1x128xf32>
    %200 = vector.shape_cast %199 : vector<1x1x128xf32> to vector<128xf32>
    %201 = vector.shape_cast %200 : vector<128xf32> to vector<1x128xf32>
    %202 = vector.broadcast %201 : vector<1x128xf32> to vector<32x128xf32>
    %203 = arith.addf %198, %202 : vector<32x128xf32>
    %204 = arith.negf %203 : vector<32x128xf32>
    %205 = math.exp %204 : vector<32x128xf32>
    %cst_82 = arith.constant 1.000000e+00 : f32
    %206 = vector.broadcast %cst_82 : f32 to vector<32x128xf32>
    %207 = arith.addf %206, %205 : vector<32x128xf32>
    %208 = arith.divf %206, %207 : vector<32x128xf32>
    %209 = arith.mulf %203, %208 : vector<32x128xf32>
    %210 = arith.truncf %209 : vector<32x128xf32> to vector<32x128xbf16>
    %cst_83 = arith.constant dense<0.000000e+00> : vector<32x128xf32>
    %211 = tpu.matmul %210, %4, %cst_83 {dimension_numbers = #tpu.dot_dimension_numbers<[1], [0], [0], [1], [0, 0, 1, 1], [], []>} : vector<32x128xbf16>, vector<128x128xbf16>, vector<32x128xf32> -> vector<32x128xf32>
    %212 = vector.broadcast %5 : vector<1x128xf32> to vector<32x128xf32>
    %213 = arith.addf %211, %212 : vector<32x128xf32>
    %214 = vector.broadcast %193 : f32 to vector<32x128xf32>
    %215 = arith.mulf %214, %213 : vector<32x128xf32>
    %216 = arith.subf %187, %215 : vector<32x128xf32>
    %217 = vector.broadcast %191 : f32 to vector<32x128xf32>
    %218 = arith.mulf %217, %216 : vector<32x128xf32>
    %c0_84 = arith.constant 0 : index
    %c5_85 = arith.constant 5 : index
    %c0_86 = arith.constant 0 : index
    %c0_87 = arith.constant 0 : index
    %219 = vector.load %arg3[%c0_84, %c5_85, %c0_86, %c0_87] : memref<1x8x32x128xf32, #tpu.memory_space<vmem>>, vector<1x1x32x128xf32>
    %220 = vector.shape_cast %219 : vector<1x1x32x128xf32> to vector<32x128xf32>
    %221 = vector.broadcast %195 : f32 to vector<32x128xf32>
    %222 = arith.mulf %221, %220 : vector<32x128xf32>
    %223 = arith.addf %218, %222 : vector<32x128xf32>
    %c8_i32_88 = arith.constant 8 : i32
    %224 = arith.muli %arg0, %c8_i32_88 : i32
    %c6_i32 = arith.constant 6 : i32
    %225 = arith.addi %224, %c6_i32 : i32
    %c0_89 = arith.constant 0 : index
    %226 = arith.index_cast %225 : i32 to index
    %227 = memref.load %arg1[%c0_89, %226] : memref<3x16xf32, #tpu.memory_space<smem>>
    %c1_90 = arith.constant 1 : index
    %228 = arith.index_cast %225 : i32 to index
    %229 = memref.load %arg1[%c1_90, %228] : memref<3x16xf32, #tpu.memory_space<smem>>
    %c2_91 = arith.constant 2 : index
    %230 = arith.index_cast %225 : i32 to index
    %231 = memref.load %arg1[%c2_91, %230] : memref<3x16xf32, #tpu.memory_space<smem>>
    %232 = arith.truncf %223 : vector<32x128xf32> to vector<32x128xbf16>
    %cst_92 = arith.constant dense<0.000000e+00> : vector<32x128xf32>
    %233 = tpu.matmul %232, %3, %cst_92 {dimension_numbers = #tpu.dot_dimension_numbers<[1], [0], [0], [1], [0, 0, 1, 1], [], []>} : vector<32x128xbf16>, vector<128x128xbf16>, vector<32x128xf32> -> vector<32x128xf32>
    %234 = arith.addf %233, %6 : vector<32x128xf32>
    %c0_93 = arith.constant 0 : index
    %c6 = arith.constant 6 : index
    %c0_94 = arith.constant 0 : index
    %235 = vector.load %arg4[%c0_93, %c6, %c0_94] : memref<1x8x128xf32, #tpu.memory_space<vmem>>, vector<1x1x128xf32>
    %236 = vector.shape_cast %235 : vector<1x1x128xf32> to vector<128xf32>
    %237 = vector.shape_cast %236 : vector<128xf32> to vector<1x128xf32>
    %238 = vector.broadcast %237 : vector<1x128xf32> to vector<32x128xf32>
    %239 = arith.addf %234, %238 : vector<32x128xf32>
    %240 = arith.negf %239 : vector<32x128xf32>
    %241 = math.exp %240 : vector<32x128xf32>
    %cst_95 = arith.constant 1.000000e+00 : f32
    %242 = vector.broadcast %cst_95 : f32 to vector<32x128xf32>
    %243 = arith.addf %242, %241 : vector<32x128xf32>
    %244 = arith.divf %242, %243 : vector<32x128xf32>
    %245 = arith.mulf %239, %244 : vector<32x128xf32>
    %246 = arith.truncf %245 : vector<32x128xf32> to vector<32x128xbf16>
    %cst_96 = arith.constant dense<0.000000e+00> : vector<32x128xf32>
    %247 = tpu.matmul %246, %4, %cst_96 {dimension_numbers = #tpu.dot_dimension_numbers<[1], [0], [0], [1], [0, 0, 1, 1], [], []>} : vector<32x128xbf16>, vector<128x128xbf16>, vector<32x128xf32> -> vector<32x128xf32>
    %248 = vector.broadcast %5 : vector<1x128xf32> to vector<32x128xf32>
    %249 = arith.addf %247, %248 : vector<32x128xf32>
    %250 = vector.broadcast %229 : f32 to vector<32x128xf32>
    %251 = arith.mulf %250, %249 : vector<32x128xf32>
    %252 = arith.subf %223, %251 : vector<32x128xf32>
    %253 = vector.broadcast %227 : f32 to vector<32x128xf32>
    %254 = arith.mulf %253, %252 : vector<32x128xf32>
    %c0_97 = arith.constant 0 : index
    %c6_98 = arith.constant 6 : index
    %c0_99 = arith.constant 0 : index
    %c0_100 = arith.constant 0 : index
    %255 = vector.load %arg3[%c0_97, %c6_98, %c0_99, %c0_100] : memref<1x8x32x128xf32, #tpu.memory_space<vmem>>, vector<1x1x32x128xf32>
    %256 = vector.shape_cast %255 : vector<1x1x32x128xf32> to vector<32x128xf32>
    %257 = vector.broadcast %231 : f32 to vector<32x128xf32>
    %258 = arith.mulf %257, %256 : vector<32x128xf32>
    %259 = arith.addf %254, %258 : vector<32x128xf32>
    %c8_i32_101 = arith.constant 8 : i32
    %260 = arith.muli %arg0, %c8_i32_101 : i32
    %c7_i32 = arith.constant 7 : i32
    %261 = arith.addi %260, %c7_i32 : i32
    %c0_102 = arith.constant 0 : index
    %262 = arith.index_cast %261 : i32 to index
    %263 = memref.load %arg1[%c0_102, %262] : memref<3x16xf32, #tpu.memory_space<smem>>
    %c1_103 = arith.constant 1 : index
    %264 = arith.index_cast %261 : i32 to index
    %265 = memref.load %arg1[%c1_103, %264] : memref<3x16xf32, #tpu.memory_space<smem>>
    %c2_104 = arith.constant 2 : index
    %266 = arith.index_cast %261 : i32 to index
    %267 = memref.load %arg1[%c2_104, %266] : memref<3x16xf32, #tpu.memory_space<smem>>
    %268 = arith.truncf %259 : vector<32x128xf32> to vector<32x128xbf16>
    %cst_105 = arith.constant dense<0.000000e+00> : vector<32x128xf32>
    %269 = tpu.matmul %268, %3, %cst_105 {dimension_numbers = #tpu.dot_dimension_numbers<[1], [0], [0], [1], [0, 0, 1, 1], [], []>} : vector<32x128xbf16>, vector<128x128xbf16>, vector<32x128xf32> -> vector<32x128xf32>
    %270 = arith.addf %269, %6 : vector<32x128xf32>
    %c0_106 = arith.constant 0 : index
    %c7 = arith.constant 7 : index
    %c0_107 = arith.constant 0 : index
    %271 = vector.load %arg4[%c0_106, %c7, %c0_107] : memref<1x8x128xf32, #tpu.memory_space<vmem>>, vector<1x1x128xf32>
    %272 = vector.shape_cast %271 : vector<1x1x128xf32> to vector<128xf32>
    %273 = vector.shape_cast %272 : vector<128xf32> to vector<1x128xf32>
    %274 = vector.broadcast %273 : vector<1x128xf32> to vector<32x128xf32>
    %275 = arith.addf %270, %274 : vector<32x128xf32>
    %276 = arith.negf %275 : vector<32x128xf32>
    %277 = math.exp %276 : vector<32x128xf32>
    %cst_108 = arith.constant 1.000000e+00 : f32
    %278 = vector.broadcast %cst_108 : f32 to vector<32x128xf32>
    %279 = arith.addf %278, %277 : vector<32x128xf32>
    %280 = arith.divf %278, %279 : vector<32x128xf32>
    %281 = arith.mulf %275, %280 : vector<32x128xf32>
    %282 = arith.truncf %281 : vector<32x128xf32> to vector<32x128xbf16>
    %cst_109 = arith.constant dense<0.000000e+00> : vector<32x128xf32>
    %283 = tpu.matmul %282, %4, %cst_109 {dimension_numbers = #tpu.dot_dimension_numbers<[1], [0], [0], [1], [0, 0, 1, 1], [], []>} : vector<32x128xbf16>, vector<128x128xbf16>, vector<32x128xf32> -> vector<32x128xf32>
    %284 = vector.broadcast %5 : vector<1x128xf32> to vector<32x128xf32>
    %285 = arith.addf %283, %284 : vector<32x128xf32>
    %286 = vector.broadcast %265 : f32 to vector<32x128xf32>
    %287 = arith.mulf %286, %285 : vector<32x128xf32>
    %288 = arith.subf %259, %287 : vector<32x128xf32>
    %289 = vector.broadcast %263 : f32 to vector<32x128xf32>
    %290 = arith.mulf %289, %288 : vector<32x128xf32>
    %c0_110 = arith.constant 0 : index
    %c7_111 = arith.constant 7 : index
    %c0_112 = arith.constant 0 : index
    %c0_113 = arith.constant 0 : index
    %291 = vector.load %arg3[%c0_110, %c7_111, %c0_112, %c0_113] : memref<1x8x32x128xf32, #tpu.memory_space<vmem>>, vector<1x1x32x128xf32>
    %292 = vector.shape_cast %291 : vector<1x1x32x128xf32> to vector<32x128xf32>
    %293 = vector.broadcast %267 : f32 to vector<32x128xf32>
    %294 = arith.mulf %293, %292 : vector<32x128xf32>
    %295 = arith.addf %290, %294 : vector<32x128xf32>
    %c0_114 = arith.constant 0 : index
    %c0_115 = arith.constant 0 : index
    %296 = vector.load %arg9[%c0_114, %c0_115] : memref<32x128xf32, #tpu.memory_space<vmem>>, vector<32x128xf32>
    tpu.vector_store %arg9[%c0_114, %c0_115], %295 {strides = array<i32>} : memref<32x128xf32, #tpu.memory_space<vmem>>, vector<32x128xf32>,
    return
  }
  func.func @transform_0(%arg0: i32) -> (i32, i32) {
    %c0_i32 = arith.constant 0 : i32
    %c0_i32_0 = arith.constant 0 : i32
    %c0_i32_1 = arith.constant 0 : i32
    return %c0_i32, %c0_i32_0 : i32, i32
  }
  func.func @transform_1(%arg0: i32) -> (i32, i32) {
    %c0_i32 = arith.constant 0 : i32
    %c0_i32_0 = arith.constant 0 : i32
    %c0_i32_1 = arith.constant 0 : i32
    return %c0_i32, %c0_i32_0 : i32, i32
  }
  func.func @transform_2(%arg0: i32) -> (i32, i32, i32, i32) {
    %c0_i32 = arith.constant 0 : i32
    %c0_i32_0 = arith.constant 0 : i32
    %c0_i32_1 = arith.constant 0 : i32
    %c0_i32_2 = arith.constant 0 : i32
    return %arg0, %c0_i32, %c0_i32_0, %c0_i32_1 : i32, i32, i32, i32
  }
  func.func @transform_3(%arg0: i32) -> (i32, i32, i32) {
    %c0_i32 = arith.constant 0 : i32
    %c0_i32_0 = arith.constant 0 : i32
    %c0_i32_1 = arith.constant 0 : i32
    return %arg0, %c0_i32, %c0_i32_0 : i32, i32, i32
  }
  func.func @transform_4(%arg0: i32) -> (i32, i32) {
    %c0_i32 = arith.constant 0 : i32
    %c0_i32_0 = arith.constant 0 : i32
    %c0_i32_1 = arith.constant 0 : i32
    return %c0_i32, %c0_i32_0 : i32, i32
  }
  func.func @transform_5(%arg0: i32) -> (i32, i32) {
    %c0_i32 = arith.constant 0 : i32
    %c0_i32_0 = arith.constant 0 : i32
    %c0_i32_1 = arith.constant 0 : i32
    return %c0_i32, %c0_i32_0 : i32, i32
  }
  func.func @transform_6(%arg0: i32) -> (i32, i32) {
    %c0_i32 = arith.constant 0 : i32
    %c0_i32_0 = arith.constant 0 : i32
    %c0_i32_1 = arith.constant 0 : i32
    return %c0_i32, %c0_i32_0 : i32, i32
  }
  func.func @transform_7(%arg0: i32) -> (i32, i32) {
    %c0_i32 = arith.constant 0 : i32
    %c0_i32_0 = arith.constant 0 : i32
    %c0_i32_1 = arith.constant 0 : i32
    return %c0_i32, %c0_i32_0 : i32, i32
  }
  func.func @transform_8(%arg0: i32) -> (i32, i32) {
    %c0_i32 = arith.constant 0 : i32
    %c0_i32_0 = arith.constant 0 : i32
    %c0_i32_1 = arith.constant 0 : i32
    return %c0_i32, %c0_i32_0 : i32, i32
  }
}

</mosaic_0001>

<llo_original>
// kernel: ddpm_conditional_sample.1
$region0: #{ddpm_conditional_sample.1}
  #allocation0 [shape = 'u32[]', space=smem, size = 0x4, offset = 0x4, fixed_abs, tag = 'smem constant byte address 0x4 - core index']
  #allocation1 [shape = 'u32[144,128]{1,0:T(1,128)}', space=vmem, size = 0x12000, scoped, tag = 'internal scratch']
  %s0 = inlined_call_operand.vmem [shape: f32[3,16], index: 0, kind: input, shape index: {}]
  %s1 = inlined_call_operand.vmem [shape: f32[32,128], index: 1, kind: input, shape index: {}]
  %s2 = inlined_call_operand.vmem [shape: f32[2,8,32,128], index: 2, kind: input, shape index: {}]
  %s3 = inlined_call_operand.vmem [shape: f32[2,8,128], index: 3, kind: input, shape index: {}]
  %s4 = inlined_call_operand.vmem [shape: f32[32,128], index: 4, kind: input, shape index: {}]
  %s5 = inlined_call_operand.vmem [shape: bf16[128,128], index: 5, kind: input, shape index: {}]
  %s6 = inlined_call_operand.vmem [shape: bf16[128,128], index: 6, kind: input, shape index: {}]
  %s7 = inlined_call_operand.vmem [shape: f32[1,128], index: 7, kind: input, shape index: {}]
  %s8 = inlined_call_operand.hbm [shape: f32[32,128], index: 8, kind: output, shape index: {}]
  %s9 = sld [smem:[#allocation0]]
  $region73: #{ddpm_conditional_sample.1} parent=0
    _
  %s11 = ssub.s32 1, %s9
  %s12 = scalar_select 0, %s11, %s9
  $region1: #{ddpm_conditional_sample.1} parent=0
    #allocation2 [shape = 'u8[2048]{0}', space=smem, size = 0x800, scoped, tag = 'input window, operand 0, single buffered']
    #allocation3 [shape = 's32[2]{0}', space=sflag, size = 0x8, scoped, tag = 'scoped memory for ddpm_conditional_sample.1']
    #allocation4 [shape = 's32[2]{0}', space=sflag, size = 0x8, scoped, tag = 'scoped memory for ddpm_conditional_sample.1']
    #allocation5 [shape = 'u8[16384]{0}', space=vmem, size = 0x4000, scoped, tag = 'output window, operand 0, single buffered']
    %13 = vsyncpa [#allocation4], 0
    %14 = vsyncpa [#allocation3], 0
    loop: start=0, step=1, limit=4
    $region2: #{ddpm_conditional_sample.1} parent=1 // loop_pre_header
      _
    $region3: #{ddpm_conditional_sample.1} parent=1 // loop_header
      %s16 = sphi 0, %s20
      %p17 = scmp.ge.s32.totalorder %s16, 4
      %s24 = sphi 0, %s24
      %s26 = sphi 0, %s24
      %s27 = sphi 0, %s26
      %s41 = sphi 0, %s27
      %s45 = sphi 0, %s45
      %s47 = sphi 0, %s45
      %s48 = sphi 0, %s47
      %s62 = sphi 0, %s48
      %s68 = sphi 0, %s70
      %s71 = sphi 0, %s68
      %s72 = sphi 0, %s71
      %s88 = sphi 0, %s72
      %s94 = sphi 0, %s96
      %s97 = sphi 0, %s94
      %s98 = sphi 0, %s97
      %s114 = sphi 0, %s98
      %s118 = sphi 0, %s118
      %s120 = sphi 0, %s118
      %s121 = sphi 0, %s120
      %s135 = sphi 0, %s121
      %s139 = sphi 0, %s139
      %s141 = sphi 0, %s139
      %s142 = sphi 0, %s141
      %s156 = sphi 0, %s142
      %s160 = sphi 0, %s160
      %s162 = sphi 0, %s160
      %s163 = sphi 0, %s162
      %s177 = sphi 0, %s163
      %s181 = sphi 0, %s181
      %s183 = sphi 0, %s181
      %s184 = sphi 0, %s183
      %s198 = sphi 0, %s184
      %s202 = sphi 0, %s202
      %s204 = sphi 0, %s202
      %s205 = sphi 0, %s204
      %s219 = sphi 0, %s205
    $region4: #{ddpm_conditional_sample.1} parent=1 // loop_header_branch
      %19 = sbr.rel (%p17) target = $region8
    $region5: #{ddpm_conditional_sample.1} parent=1 // loop_body
      %s21 = ssub.s32 %s16, 1
      %s22 = ssub.s32 %s16, 2
      %s23 = sadd.s32 %s16, 1
      %s25 = sadd.s32 %s24, 1
      %p28 = scmp.eq.s32.totalorder %s16, 1
      %p29 = scmp.ne.s32.totalorder %s24, %s26
      %p30 = scmp.eq.s32.totalorder %s16, 0
      %p31 = por %p29, %p30
      %p32 = scmp.ne.s32.totalorder %s24, %s26
      %p33 = scmp.eq.s32.totalorder %s21, 1
      %p34 = por %p32, %p33
      %p35 = scmp.ne.s32.totalorder %s26, %s27
      %p36 = scmp.eq.s32.totalorder %s21, 0
      %p37 = por %p35, %p36
      %p38 = scmp.ne.s32.totalorder %s26, %s27
      %p39 = scmp.eq.s32.totalorder %s22, 1
      %p40 = por %p38, %p39
      %p42 = scmp.ne.s32.totalorder %s27, %s41
      %p43 = scmp.eq.s32.totalorder %s22, 0
      %p44 = por %p42, %p43
      %s46 = sadd.s32 %s45, 1
      %p49 = scmp.eq.s32.totalorder %s16, 1
      %p50 = scmp.ne.s32.totalorder %s45, %s47
      %p51 = scmp.eq.s32.totalorder %s16, 0
      %p52 = por %p50, %p51
      %p53 = scmp.ne.s32.totalorder %s45, %s47
      %p54 = scmp.eq.s32.totalorder %s21, 1
      %p55 = por %p53, %p54
      %p56 = scmp.ne.s32.totalorder %s47, %s48
      %p57 = scmp.eq.s32.totalorder %s21, 0
      %p58 = por %p56, %p57
      %p59 = scmp.ne.s32.totalorder %s47, %s48
      %p60 = scmp.eq.s32.totalorder %s22, 1
      %p61 = por %p59, %p60
      %p63 = scmp.ne.s32.totalorder %s48, %s62
      %p64 = scmp.eq.s32.totalorder %s22, 0
      %p65 = por %p63, %p64
      %s66 = ssub.s32 %s16, %s23
      %p67 = scmp.eq.s32.totalorder %s66, 0
      %s69 = sadd.s32 %s68, 1
      %s70 = scalar_select %p67, %s68, %s69
      %p73 = pneg %p67
      %p74 = scmp.eq.s32.totalorder %s16, 1
      %p75 = por %p73, %p74
      %p76 = scmp.ne.s32.totalorder %s68, %s71
      %p77 = scmp.eq.s32.totalorder %s16, 0
      %p78 = por %p76, %p77
      %p79 = scmp.ne.s32.totalorder %s68, %s71
      %p80 = scmp.eq.s32.totalorder %s21, 1
      %p81 = por %p79, %p80
      %p82 = scmp.ne.s32.totalorder %s71, %s72
      %p83 = scmp.eq.s32.totalorder %s21, 0
      %p84 = por %p82, %p83
      %p85 = scmp.ne.s32.totalorder %s71, %s72
      %p86 = scmp.eq.s32.totalorder %s22, 1
      %p87 = por %p85, %p86
      %p89 = scmp.ne.s32.totalorder %s72, %s88
      %p90 = scmp.eq.s32.totalorder %s22, 0
      %p91 = por %p89, %p90
      %s92 = ssub.s32 %s16, %s23
      %p93 = scmp.eq.s32.totalorder %s92, 0
      %s95 = sadd.s32 %s94, 1
      %s96 = scalar_select %p93, %s94, %s95
      %p99 = pneg %p93
      %p100 = scmp.eq.s32.totalorder %s16, 1
      %p101 = por %p99, %p100
      %p102 = scmp.ne.s32.totalorder %s94, %s97
      %p103 = scmp.eq.s32.totalorder %s16, 0
      %p104 = por %p102, %p103
      %p105 = scmp.ne.s32.totalorder %s94, %s97
      %p106 = scmp.eq.s32.totalorder %s21, 1
      %p107 = por %p105, %p106
      %p108 = scmp.ne.s32.totalorder %s97, %s98
      %p109 = scmp.eq.s32.totalorder %s21, 0
      %p110 = por %p108, %p109
      %p111 = scmp.ne.s32.totalorder %s97, %s98
      %p112 = scmp.eq.s32.totalorder %s22, 1
      %p113 = por %p111, %p112
      %p115 = scmp.ne.s32.totalorder %s98, %s114
      %p116 = scmp.eq.s32.totalorder %s22, 0
      %p117 = por %p115, %p116
      %s119 = sadd.s32 %s118, 1
      %p122 = scmp.eq.s32.totalorder %s16, 1
      %p123 = scmp.ne.s32.totalorder %s118, %s120
      %p124 = scmp.eq.s32.totalorder %s16, 0
      %p125 = por %p123, %p124
      %p126 = scmp.ne.s32.totalorder %s118, %s120
      %p127 = scmp.eq.s32.totalorder %s21, 1
      %p128 = por %p126, %p127
      %p129 = scmp.ne.s32.totalorder %s120, %s121
      %p130 = scmp.eq.s32.totalorder %s21, 0
      %p131 = por %p129, %p130
      %p132 = scmp.ne.s32.totalorder %s120, %s121
      %p133 = scmp.eq.s32.totalorder %s22, 1
      %p134 = por %p132, %p133
      %p136 = scmp.ne.s32.totalorder %s121, %s135
      %p137 = scmp.eq.s32.totalorder %s22, 0
      %p138 = por %p136, %p137
      %s140 = sadd.s32 %s139, 1
      %p143 = scmp.eq.s32.totalorder %s16, 1
      %p144 = scmp.ne.s32.totalorder %s139, %s141
      %p145 = scmp.eq.s32.totalorder %s16, 0
      %p146 = por %p144, %p145
      %p147 = scmp.ne.s32.totalorder %s139, %s141
      %p148 = scmp.eq.s32.totalorder %s21, 1
      %p149 = por %p147, %p148
      %p150 = scmp.ne.s32.totalorder %s141, %s142
      %p151 = scmp.eq.s32.totalorder %s21, 0
      %p152 = por %p150, %p151
      %p153 = scmp.ne.s32.totalorder %s141, %s142
      %p154 = scmp.eq.s32.totalorder %s22, 1
      %p155 = por %p153, %p154
      %p157 = scmp.ne.s32.totalorder %s142, %s156
      %p158 = scmp.eq.s32.totalorder %s22, 0
      %p159 = por %p157, %p158
      %s161 = sadd.s32 %s160, 1
      %p164 = scmp.eq.s32.totalorder %s16, 1
      %p165 = scmp.ne.s32.totalorder %s160, %s162
      %p166 = scmp.eq.s32.totalorder %s16, 0
      %p167 = por %p165, %p166
      %p168 = scmp.ne.s32.totalorder %s160, %s162
      %p169 = scmp.eq.s32.totalorder %s21, 1
      %p170 = por %p168, %p169
      %p171 = scmp.ne.s32.totalorder %s162, %s163
      %p172 = scmp.eq.s32.totalorder %s21, 0
      %p173 = por %p171, %p172
      %p174 = scmp.ne.s32.totalorder %s162, %s163
      %p175 = scmp.eq.s32.totalorder %s22, 1
      %p176 = por %p174, %p175
      %p178 = scmp.ne.s32.totalorder %s163, %s177
      %p179 = scmp.eq.s32.totalorder %s22, 0
      %p180 = por %p178, %p179
      %s182 = sadd.s32 %s181, 1
      %p185 = scmp.eq.s32.totalorder %s16, 1
      %p186 = scmp.ne.s32.totalorder %s181, %s183
      %p187 = scmp.eq.s32.totalorder %s16, 0
      %p188 = por %p186, %p187
      %p189 = scmp.ne.s32.totalorder %s181, %s183
      %p190 = scmp.eq.s32.totalorder %s21, 1
      %p191 = por %p189, %p190
      %p192 = scmp.ne.s32.totalorder %s183, %s184
      %p193 = scmp.eq.s32.totalorder %s21, 0
      %p194 = por %p192, %p193
      %p195 = scmp.ne.s32.totalorder %s183, %s184
      %p196 = scmp.eq.s32.totalorder %s22, 1
      %p197 = por %p195, %p196
      %p199 = scmp.ne.s32.totalorder %s184, %s198
      %p200 = scmp.eq.s32.totalorder %s22, 0
      %p201 = por %p199, %p200
      %s203 = sadd.s32 %s202, 1
      %p206 = scmp.eq.s32.totalorder %s16, 1
      %p207 = scmp.ne.s32.totalorder %s202, %s204
      %p208 = scmp.eq.s32.totalorder %s16, 0
      %p209 = por %p207, %p208
      %p210 = scmp.ne.s32.totalorder %s202, %s204
      %p211 = scmp.eq.s32.totalorder %s21, 1
      %p212 = por %p210, %p211
      %p213 = scmp.ne.s32.totalorder %s204, %s205
      %p214 = scmp.eq.s32.totalorder %s21, 0
      %p215 = por %p213, %p214
      %p216 = scmp.ne.s32.totalorder %s204, %s205
      %p217 = scmp.eq.s32.totalorder %s22, 1
      %p218 = por %p216, %p217
      %p220 = scmp.ne.s32.totalorder %s205, %s219
      %p221 = scmp.eq.s32.totalorder %s22, 0
      %p222 = por %p220, %p221
      %p223 = scmp.le.s32.totalorder 1, %s16
      %p224 = scmp.lt.s32.totalorder %s16, 3
      %p225 = pnand %p223, %p224
      %p226 = pneg %p225
      // Predicated region
      $region9: #{ddpm_conditional_sample.1} parent=5 // pred_check
        _
      $region10: #{ddpm_conditional_sample.1} parent=5 // pred_check_branch
        %228 = sbr.rel (%p225) target = $region12
      $region11: #{ddpm_conditional_sample.1} parent=5 // pred_region
        %s229 = ssub.s32 %s16, 1
        // Predicated region
        $region13: #{ddpm_conditional_sample.1} parent=11 // pred_check
          %p230 = pneg %p37
        $region14: #{ddpm_conditional_sample.1} parent=11 // pred_check_branch
          %232 = sbr.rel (%p230) target = $region16
        $region15: #{ddpm_conditional_sample.1} parent=11 // pred_region
          %s234 = ssub.s32 64, 64
          %235 = vsyncadd [#allocation4], %s234
          %s237 = sshll.u32 %s0, 4
          %s238 = int_to_ptr.vmem [resolvable:$true] %s237
          %240 = dma.vmem_to_smem %s238, 64, [#allocation2], [#allocation4]
        $region16: #{ddpm_conditional_sample.1} parent=11 // pred_fallthru
          _
        // Predicated region
        $region17: #{ddpm_conditional_sample.1} parent=11 // pred_check
          %p241 = pneg %p58
        $region18: #{ddpm_conditional_sample.1} parent=11 // pred_check_branch
          %243 = sbr.rel (%p241) target = $region20
        $region19: #{ddpm_conditional_sample.1} parent=11 // pred_region
          _
        $region20: #{ddpm_conditional_sample.1} parent=11 // pred_fallthru
          _
        // Predicated region
        $region21: #{ddpm_conditional_sample.1} parent=11 // pred_check
          %p244 = pneg %p131
        $region22: #{ddpm_conditional_sample.1} parent=11 // pred_check_branch
          %246 = sbr.rel (%p244) target = $region24
        $region23: #{ddpm_conditional_sample.1} parent=11 // pred_region
          _
        $region24: #{ddpm_conditional_sample.1} parent=11 // pred_fallthru
          _
        // Predicated region
        $region25: #{ddpm_conditional_sample.1} parent=11 // pred_check
          %p247 = pneg %p152
        $region26: #{ddpm_conditional_sample.1} parent=11 // pred_check_branch
          %249 = sbr.rel (%p247) target = $region28
        $region27: #{ddpm_conditional_sample.1} parent=11 // pred_region
          _
        $region28: #{ddpm_conditional_sample.1} parent=11 // pred_fallthru
          _
        // Predicated region
        $region29: #{ddpm_conditional_sample.1} parent=11 // pred_check
          %p250 = pneg %p173
        $region30: #{ddpm_conditional_sample.1} parent=11 // pred_check_branch
          %252 = sbr.rel (%p250) target = $region32
        $region31: #{ddpm_conditional_sample.1} parent=11 // pred_region
          _
        $region32: #{ddpm_conditional_sample.1} parent=11 // pred_fallthru
          _
        // Predicated region
        $region33: #{ddpm_conditional_sample.1} parent=11 // pred_check
          %p253 = pneg %p194
        $region34: #{ddpm_conditional_sample.1} parent=11 // pred_check_branch
          %255 = sbr.rel (%p253) target = $region36
        $region35: #{ddpm_conditional_sample.1} parent=11 // pred_region
          _
        $region36: #{ddpm_conditional_sample.1} parent=11 // pred_fallthru
          _
      $region12: #{ddpm_conditional_sample.1} parent=5 // pred_fallthru
        _
      %p256 = scmp.lt.s32.totalorder %s16, 2
      // Predicated region
      $region37: #{ddpm_conditional_sample.1} parent=5 // pred_check
        %p257 = pneg %p256
      $region38: #{ddpm_conditional_sample.1} parent=5 // pred_check_branch
        %259 = sbr.rel (%p257) target = $region40
      $region39: #{ddpm_conditional_sample.1} parent=5 // pred_region
        // Predicated region
        $region41: #{ddpm_conditional_sample.1} parent=39 // pred_check
          %p260 = pneg %p78
        $region42: #{ddpm_conditional_sample.1} parent=39 // pred_check_branch
          %262 = sbr.rel (%p260) target = $region44
        $region43: #{ddpm_conditional_sample.1} parent=39 // pred_region
          %p263 = scmp.lt.s32.totalorder %s16, 1
          %s264 = scalar_select %p263, %s16, 1
          %s265 = smul.addr %s264, 32
          %s266 = smul.addr %s265, 8
          %s267 = scalar_lea.vmem %s2, %s266
        $region44: #{ddpm_conditional_sample.1} parent=39 // pred_fallthru
          _
        // Predicated region
        $region45: #{ddpm_conditional_sample.1} parent=39 // pred_check
          %p268 = pneg %p104
        $region46: #{ddpm_conditional_sample.1} parent=39 // pred_check_branch
          %270 = sbr.rel (%p268) target = $region48
        $region47: #{ddpm_conditional_sample.1} parent=39 // pred_region
          %p271 = scmp.lt.s32.totalorder %s16, 1
          %s272 = scalar_select %p271, %s16, 1
          %s273 = smul.addr %s272, 8
          %s274 = scalar_lea.vmem %s3, %s273
        $region48: #{ddpm_conditional_sample.1} parent=39 // pred_fallthru
          _
      $region40: #{ddpm_conditional_sample.1} parent=5 // pred_fallthru
        _
      %p275 = scmp.le.s32.totalorder 1, %s16
      %p276 = scmp.lt.s32.totalorder %s16, 3
      %p277 = pnand %p275, %p276
      %p278 = pneg %p277
      // Predicated region
      $region49: #{ddpm_conditional_sample.1} parent=5 // pred_check
        _
      $region50: #{ddpm_conditional_sample.1} parent=5 // pred_check_branch
        %280 = sbr.rel (%p277) target = $region52
      $region51: #{ddpm_conditional_sample.1} parent=5 // pred_region
        %s281 = ssub.s32 %s16, 1
        // Predicated region
        $region53: #{ddpm_conditional_sample.1} parent=51 // pred_check
          %p282 = pneg %p37
        $region54: #{ddpm_conditional_sample.1} parent=51 // pred_check_branch
          %284 = sbr.rel (%p282) target = $region56
        $region55: #{ddpm_conditional_sample.1} parent=51 // pred_region
          %285 = dma.done [#allocation4], 64
        $region56: #{ddpm_conditional_sample.1} parent=51 // pred_fallthru
          _
        %286 = sfence
        %p287 = pneg %p37
        %p288 = pneg %p34
        %p289 = pneg %p58
        %p290 = pneg %p55
        %p291 = scmp.lt.s32.totalorder %s21, 1
        %s292 = scalar_select %p291, %s21, 1
        %s293 = smul.addr %s292, 32
        %s294 = smul.addr %s293, 8
        %s295 = scalar_lea.vmem %s2, %s294
        %p296 = pneg %p84
        %p297 = pneg %p81
        %p298 = scmp.lt.s32.totalorder %s21, 1
        %s299 = scalar_select %p298, %s21, 1
        %s300 = smul.addr %s299, 8
        %s301 = scalar_lea.vmem %s3, %s300
        %p302 = pneg %p110
        %p303 = pneg %p107
        %p304 = pneg %p131
        %p305 = pneg %p128
        %p306 = pneg %p152
        %p307 = pneg %p149
        %p308 = pneg %p173
        %p309 = pneg %p170
        %p310 = pneg %p194
        %p311 = pneg %p191
        %p312 = pneg %p215
        %p313 = pneg %p212
        %p314 = scmp.lt.s32.totalorder %s21, 1
        %s315 = scalar_select %p314, %s21, 1
        %s316 = smul.addr %s315, 32
        %s317 = smul.addr %s316, 8
        %s318 = scalar_lea.vmem %s2, %s317
        %p319 = scmp.lt.s32.totalorder %s21, 1
        %s320 = scalar_select %p319, %s21, 1
        %s321 = smul.addr %s320, 8
        %s322 = scalar_lea.vmem %s3, %s321
        %p324 = scmp.eq.s32.totalorder %s21, 0
        // Predicated region
        $region57: #{ddpm_conditional_sample.1} parent=51 // pred_check
          %p325 = pneg %p324
        $region58: #{ddpm_conditional_sample.1} parent=51 // pred_check_branch
          %327 = sbr.rel (%p325) target = $region60
        $region59: #{ddpm_conditional_sample.1} parent=51 // pred_region
          %v328 = vld [vmem:[%s1] sm:$0xff]
          %v329 = vld [vmem:[%s1 + $0x8] sm:$0xff]
          %v330 = vld [vmem:[%s1 + $0x10] sm:$0xff]
          %v331 = vld [vmem:[%s1 + $0x18] sm:$0xff]
          %332 = vst [vmem:[#allocation5] sm:$0xff] %v328
          %333 = vst [vmem:[#allocation5 + $0x8] sm:$0xff] %v329
          %334 = vst [vmem:[#allocation5 + $0x10] sm:$0xff] %v330
          %335 = vst [vmem:[#allocation5 + $0x18] sm:$0xff] %v331
        $region60: #{ddpm_conditional_sample.1} parent=51 // pred_fallthru
          _
        %v336 = vld [vmem:[%s5] sm:$0xf]
        %v337 = vld [vmem:[%s5 + $0x4] sm:$0xf]
        %v338 = vld [vmem:[%s5 + $0x8] sm:$0xf]
        %v339 = vld [vmem:[%s5 + $0xc] sm:$0xf]
        %v340 = vld [vmem:[%s5 + $0x10] sm:$0xf]
        %v341 = vld [vmem:[%s5 + $0x14] sm:$0xf]
        %v342 = vld [vmem:[%s5 + $0x18] sm:$0xf]
        %v343 = vld [vmem:[%s5 + $0x1c] sm:$0xf]
        %v344 = vld [vmem:[%s5 + $0x20] sm:$0xf]
        %v345 = vld [vmem:[%s5 + $0x24] sm:$0xf]
        %v346 = vld [vmem:[%s5 + $0x28] sm:$0xf]
        %v347 = vld [vmem:[%s5 + $0x2c] sm:$0xf]
        %v348 = vld [vmem:[%s5 + $0x30] sm:$0xf]
        %v349 = vld [vmem:[%s5 + $0x34] sm:$0xf]
        %v350 = vld [vmem:[%s5 + $0x38] sm:$0xf]
        %v351 = vld [vmem:[%s5 + $0x3c] sm:$0xf]
        %v352 = vld [vmem:[%s6] sm:$0xf]
        %v353 = vld [vmem:[%s6 + $0x4] sm:$0xf]
        %v354 = vld [vmem:[%s6 + $0x8] sm:$0xf]
        %v355 = vld [vmem:[%s6 + $0xc] sm:$0xf]
        %v356 = vld [vmem:[%s6 + $0x10] sm:$0xf]
        %v357 = vld [vmem:[%s6 + $0x14] sm:$0xf]
        %v358 = vld [vmem:[%s6 + $0x18] sm:$0xf]
        %v359 = vld [vmem:[%s6 + $0x1c] sm:$0xf]
        %v360 = vld [vmem:[%s6 + $0x20] sm:$0xf]
        %v361 = vld [vmem:[%s6 + $0x24] sm:$0xf]
        %v362 = vld [vmem:[%s6 + $0x28] sm:$0xf]
        %v363 = vld [vmem:[%s6 + $0x2c] sm:$0xf]
        %v364 = vld [vmem:[%s6 + $0x30] sm:$0xf]
        %v365 = vld [vmem:[%s6 + $0x34] sm:$0xf]
        %v366 = vld [vmem:[%s6 + $0x38] sm:$0xf]
        %v367 = vld [vmem:[%s6 + $0x3c] sm:$0xf]
        %v368 = vld [vmem:[%s7] sm:$0x1]
        %v369 = vld [vmem:[%s4] sm:$0xff]
        %v370 = vld [vmem:[%s4 + $0x8] sm:$0xff]
        %v371 = vld [vmem:[%s4 + $0x10] sm:$0xff]
        %v372 = vld [vmem:[%s4 + $0x18] sm:$0xff]
        %v373 = vld [vmem:[#allocation5] sm:$0xff]
        %v374 = vld [vmem:[#allocation5 + $0x8] sm:$0xff]
        %v375 = vld [vmem:[#allocation5 + $0x10] sm:$0xff]
        %v376 = vld [vmem:[#allocation5 + $0x18] sm:$0xff]
        %s377 = smul.u32 %s21, 8
        %s378 = sld [smem:[#allocation2 + %s377]]
        %s379 = sshra.s32 %s377, 7
        %s380 = sand.u32 %s377, 127
        %s381 = sadd.s32 %s379, 1
        %s382 = smul.u32 %s381, 128
        %s383 = sshra.s32 %s377, 7
        %s384 = sand.u32 %s377, 127
        %s385 = sadd.s32 %s382, %s384
        %s386 = sld [smem:[#allocation2 + %s385]]
        %s387 = sadd.s32 %s379, 2
        %s388 = smul.u32 %s387, 128
        %s389 = sadd.s32 %s388, %s384
        %s390 = sld [smem:[#allocation2 + %s389]]
        %v391 = vpack.c.bf16 %v374, %v373
        %v392 = vpack.c.bf16 %v376, %v375
        %v409 = vunpack.c.l.b16 %v336
        %v410 = vunpack.c.l.b16 %v337
        %v411 = vunpack.c.l.b16 %v338
        %v412 = vunpack.c.l.b16 %v339
        %v413 = vunpack.c.l.b16 %v340
        %v414 = vunpack.c.l.b16 %v341
        %v415 = vunpack.c.l.b16 %v342
        %v416 = vunpack.c.l.b16 %v343
        %v417 = vunpack.c.l.b16 %v344
        %v418 = vunpack.c.l.b16 %v345
        %v419 = vunpack.c.l.b16 %v346
        %v420 = vunpack.c.l.b16 %v347
        %v421 = vunpack.c.l.b16 %v348
        %v422 = vunpack.c.l.b16 %v349
        %v423 = vunpack.c.l.b16 %v350
        %v424 = vunpack.c.l.b16 %v351
        %v425 = vpack.c.b16 %v410, %v409
        %v426 = vpack.c.b16 %v412, %v411
        %v427 = vpack.c.b16 %v414, %v413
        %v428 = vpack.c.b16 %v416, %v415
        %v429 = vpack.c.b16 %v418, %v417
        %v430 = vpack.c.b16 %v420, %v419
        %v431 = vpack.c.b16 %v422, %v421
        %v432 = vpack.c.b16 %v424, %v423
        %441 = vmatprep.subr.bf16.mxu0 0
        %442 = vmatpush1.bf16.msra.mxu0 %v432
        %443 = vmatprep.subr.bf16.mxu0 0
        %444 = vmatpush1.bf16.msra.mxu0 %v431
        %445 = vmatprep.subr.bf16.mxu0 0
        %446 = vmatpush1.bf16.msra.mxu0 %v430
        %447 = vmatprep.subr.bf16.mxu0 0
        %448 = vmatpush1.bf16.msra.mxu0 %v429
        %449 = vmatprep.subr.bf16.mxu0 0
        %450 = vmatpush1.bf16.msra.mxu0 %v428
        %451 = vmatprep.subr.bf16.mxu0 0
        %452 = vmatpush1.bf16.msra.mxu0 %v427
        %453 = vmatprep.subr.bf16.mxu0 0
        %454 = vmatpush1.bf16.msra.mxu0 %v426
        %455 = vmatprep.subr.bf16.mxu0 0
        %456 = vmatpush1.bf16.msra.mxu0 %v425
        %457 = vmatprep.subr.bf16.mxu0 0
        %458 = vmatpush2.bf16.msra.mxu0 0
        %459 = vmatprep.subr.bf16.mxu0 0
        %460 = vmatpush2.bf16.msra.mxu0 0
        %461 = vmatprep.subr.bf16.mxu0 0
        %462 = vmatpush2.bf16.msra.mxu0 0
        %463 = vmatprep.subr.bf16.mxu0 0
        %464 = vmatpush2.bf16.msra.mxu0 0
        %465 = vmatprep.subr.bf16.mxu0 0
        %466 = vmatpush2.bf16.msra.mxu0 0
        %467 = vmatprep.subr.bf16.mxu0 0
        %468 = vmatpush2.bf16.msra.mxu0 0
        %469 = vmatprep.subr.bf16.mxu0 0
        %470 = vmatpush2.bf16.msra.mxu0 0
        %471 = vmatprep.subr.bf16.mxu0 0
        %472 = vmatpush2.bf16.msra.mxu0 0
        %473 = vmatprep.mubr.bf16.mxu0 0
        %474 = vmatmul.mubr.bf16.gmra.mxu0 %v391
        %v475 = vpop.f32.mrf.mxu0
        %v476 = vadd.f32 %v369, %v475
        %v477 = vpop.f32.mrf.mxu0
        %v478 = vpop.f32.mrf.mxu0
        %v479 = vadd.f32 %v370, %v478
        %v480 = vpop.f32.mrf.mxu0
        %481 = vmatprep.mubr.bf16.mxu0 0
        %482 = vmatmul.mubr.bf16.gmra.mxu0 %v392
        %v483 = vpop.f32.mrf.mxu0
        %v484 = vadd.f32 %v371, %v483
        %v485 = vpop.f32.mrf.mxu0
        %v486 = vpop.f32.mrf.mxu0
        %v487 = vadd.f32 %v372, %v486
        %v488 = vpop.f32.mrf.mxu0
        %489 = vdwg.mxu0
        %v490 = vld [vmem:[%s322] sm:$0x1]
        %v491 = vlaneseq
        %v492 = vshrl.u32 %v491, 7
        %v493 = vsub.s32 0, %v492
        %v494 = vrot.slane %v490, %v493
        %v495 = vadd.f32 %v476, %v494
        %v496 = vadd.f32 %v479, %v494
        %v497 = vadd.f32 %v484, %v494
        %v498 = vadd.f32 %v487, %v494
        %v499 = vxor.u32 %v495, 2147483648
        %v500 = vxor.u32 %v496, 2147483648
        %v501 = vxor.u32 %v497, 2147483648
        %v502 = vxor.u32 %v498, 2147483648
        %v503 = vmul.f32 %v499, 1.442695
        %v504 = vpow.pop %v503
        %v505 = vmul.f32 %v500, 1.442695
        %v506 = vpow.pop %v505
        %v507 = vmul.f32 %v501, 1.442695
        %v508 = vpow.pop %v507
        %v509 = vmul.f32 %v502, 1.442695
        %v510 = vpow.pop %v509
        %v511 = vadd.f32 %v504, 1.0
        %v512 = vadd.f32 %v506, 1.0
        %v513 = vadd.f32 %v508, 1.0
        %v514 = vadd.f32 %v510, 1.0
        %v515 = vrcp.pop %v511
        %v516 = vmul.f32 1.0, %v515
        %v517 = vrcp.pop %v512
        %v518 = vmul.f32 1.0, %v517
        %v519 = vrcp.pop %v513
        %v520 = vmul.f32 1.0, %v519
        %v521 = vrcp.pop %v514
        %v522 = vmul.f32 1.0, %v521
        %v523 = vmul.f32 %v495, %v516
        %v524 = vmul.f32 %v496, %v518
        %v525 = vmul.f32 %v497, %v520
        %v526 = vmul.f32 %v498, %v522
        %v527 = vpack.c.bf16 %v524, %v523
        %v528 = vpack.c.bf16 %v526, %v525
        %v530 = vlaneseq
        %v531 = vshrl.u32 %v530, 7
        %v532 = vsub.s32 0, %v531
        %v533 = vrot.slane %v368, %v532
        %v551 = vunpack.c.l.b16 %v352
        %v552 = vunpack.c.l.b16 %v353
        %v553 = vunpack.c.l.b16 %v354
        %v554 = vunpack.c.l.b16 %v355
        %v555 = vunpack.c.l.b16 %v356
        %v556 = vunpack.c.l.b16 %v357
        %v557 = vunpack.c.l.b16 %v358
        %v558 = vunpack.c.l.b16 %v359
        %v559 = vunpack.c.l.b16 %v360
        %v560 = vunpack.c.l.b16 %v361
        %v561 = vunpack.c.l.b16 %v362
        %v562 = vunpack.c.l.b16 %v363
        %v563 = vunpack.c.l.b16 %v364
        %v564 = vunpack.c.l.b16 %v365
        %v565 = vunpack.c.l.b16 %v366
        %v566 = vunpack.c.l.b16 %v367
        %v567 = vpack.c.b16 %v552, %v551
        %v568 = vpack.c.b16 %v554, %v553
        %v569 = vpack.c.b16 %v556, %v555
        %v570 = vpack.c.b16 %v558, %v557
        %v571 = vpack.c.b16 %v560, %v559
        %v572 = vpack.c.b16 %v562, %v561
        %v573 = vpack.c.b16 %v564, %v563
        %v574 = vpack.c.b16 %v566, %v565
        %583 = vmatprep.subr.bf16.mxu0 0
        %584 = vmatpush1.bf16.msra.mxu0 %v574
        %585 = vmatprep.subr.bf16.mxu0 0
        %586 = vmatpush1.bf16.msra.mxu0 %v573
        %587 = vmatprep.subr.bf16.mxu0 0
        %588 = vmatpush1.bf16.msra.mxu0 %v572
        %589 = vmatprep.subr.bf16.mxu0 0
        %590 = vmatpush1.bf16.msra.mxu0 %v571
        %591 = vmatprep.subr.bf16.mxu0 0
        %592 = vmatpush1.bf16.msra.mxu0 %v570
        %593 = vmatprep.subr.bf16.mxu0 0
        %594 = vmatpush1.bf16.msra.mxu0 %v569
        %595 = vmatprep.subr.bf16.mxu0 0
        %596 = vmatpush1.bf16.msra.mxu0 %v568
        %597 = vmatprep.subr.bf16.mxu0 0
        %598 = vmatpush1.bf16.msra.mxu0 %v567
        %599 = vmatprep.subr.bf16.mxu0 0
        %600 = vmatpush2.bf16.msra.mxu0 0
        %601 = vmatprep.subr.bf16.mxu0 0
        %602 = vmatpush2.bf16.msra.mxu0 0
        %603 = vmatprep.subr.bf16.mxu0 0
        %604 = vmatpush2.bf16.msra.mxu0 0
        %605 = vmatprep.subr.bf16.mxu0 0
        %606 = vmatpush2.bf16.msra.mxu0 0
        %607 = vmatprep.subr.bf16.mxu0 0
        %608 = vmatpush2.bf16.msra.mxu0 0
        %609 = vmatprep.subr.bf16.mxu0 0
        %610 = vmatpush2.bf16.msra.mxu0 0
        %611 = vmatprep.subr.bf16.mxu0 0
        %612 = vmatpush2.bf16.msra.mxu0 0
        %613 = vmatprep.subr.bf16.mxu0 0
        %614 = vmatpush2.bf16.msra.mxu0 0
        %615 = vmatprep.mubr.bf16.mxu0 0
        %616 = vmatmul.mubr.bf16.gmra.mxu0 %v527
        %v617 = vpop.f32.mrf.mxu0
        %v618 = vadd.f32 %v533, %v617
        %v619 = vpop.f32.mrf.mxu0
        %v620 = vpop.f32.mrf.mxu0
        %v621 = vadd.f32 %v533, %v620
        %v622 = vpop.f32.mrf.mxu0
        %623 = vmatprep.mubr.bf16.mxu0 0
        %624 = vmatmul.mubr.bf16.gmra.mxu0 %v528
        %v625 = vpop.f32.mrf.mxu0
        %v626 = vadd.f32 %v533, %v625
        %v627 = vpop.f32.mrf.mxu0
        %v628 = vpop.f32.mrf.mxu0
        %v629 = vadd.f32 %v533, %v628
        %v630 = vpop.f32.mrf.mxu0
        %631 = vdwg.mxu0
        %v632 = vstv %s386
        %v633 = vmul.f32 %v632, %v618
        %v634 = vmul.f32 %v632, %v621
        %v635 = vmul.f32 %v632, %v626
        %v636 = vmul.f32 %v632, %v629
        %v637 = vsub.f32 %v373, %v633
        %v638 = vsub.f32 %v374, %v634
        %v639 = vsub.f32 %v375, %v635
        %v640 = vsub.f32 %v376, %v636
        %v641 = vstv %s378
        %v642 = vmul.f32 %v641, %v637
        %v643 = vmul.f32 %v641, %v638
        %v644 = vmul.f32 %v641, %v639
        %v645 = vmul.f32 %v641, %v640
        %v646 = vld [vmem:[%s318] sm:$0xff]
        %v647 = vld [vmem:[%s318 + $0x8] sm:$0xff]
        %v648 = vld [vmem:[%s318 + $0x10] sm:$0xff]
        %v649 = vld [vmem:[%s318 + $0x18] sm:$0xff]
        %v650 = vstv %s390
        %v651 = vmul.f32 %v650, %v646
        %v652 = vmul.f32 %v650, %v647
        %v653 = vmul.f32 %v650, %v648
        %v654 = vmul.f32 %v650, %v649
        %v655 = vadd.f32 %v642, %v651
        %v656 = vadd.f32 %v643, %v652
        %v657 = vadd.f32 %v644, %v653
        %v658 = vadd.f32 %v645, %v654
        %s659 = sadd.s32 %s377, 1
        %s660 = sld [smem:[#allocation2 + %s659]]
        %s661 = sshra.s32 %s659, 7
        %s662 = sand.u32 %s659, 127
        %s663 = sadd.s32 %s661, 1
        %s664 = smul.u32 %s663, 128
        %s665 = sshra.s32 %s659, 7
        %s666 = sand.u32 %s659, 127
        %s667 = sadd.s32 %s664, %s666
        %s668 = sld [smem:[#allocation2 + %s667]]
        %s669 = sadd.s32 %s661, 2
        %s670 = smul.u32 %s669, 128
        %s671 = sadd.s32 %s670, %s666
        %s672 = sld [smem:[#allocation2 + %s671]]
        %v673 = vpack.c.bf16 %v656, %v655
        %v674 = vpack.c.bf16 %v658, %v657
        %675 = vmatprep.subr.bf16.mxu0 0
        %676 = vmatpush1.bf16.msra.mxu0 %v432
        %677 = vmatprep.subr.bf16.mxu0 0
        %678 = vmatpush1.bf16.msra.mxu0 %v431
        %679 = vmatprep.subr.bf16.mxu0 0
        %680 = vmatpush1.bf16.msra.mxu0 %v430
        %681 = vmatprep.subr.bf16.mxu0 0
        %682 = vmatpush1.bf16.msra.mxu0 %v429
        %683 = vmatprep.subr.bf16.mxu0 0
        %684 = vmatpush1.bf16.msra.mxu0 %v428
        %685 = vmatprep.subr.bf16.mxu0 0
        %686 = vmatpush1.bf16.msra.mxu0 %v427
        %687 = vmatprep.subr.bf16.mxu0 0
        %688 = vmatpush1.bf16.msra.mxu0 %v426
        %689 = vmatprep.subr.bf16.mxu0 0
        %690 = vmatpush1.bf16.msra.mxu0 %v425
        %691 = vmatprep.subr.bf16.mxu0 0
        %692 = vmatpush2.bf16.msra.mxu0 0
        %693 = vmatprep.subr.bf16.mxu0 0
        %694 = vmatpush2.bf16.msra.mxu0 0
        %695 = vmatprep.subr.bf16.mxu0 0
        %696 = vmatpush2.bf16.msra.mxu0 0
        %697 = vmatprep.subr.bf16.mxu0 0
        %698 = vmatpush2.bf16.msra.mxu0 0
        %699 = vmatprep.subr.bf16.mxu0 0
        %700 = vmatpush2.bf16.msra.mxu0 0
        %701 = vmatprep.subr.bf16.mxu0 0
        %702 = vmatpush2.bf16.msra.mxu0 0
        %703 = vmatprep.subr.bf16.mxu0 0
        %704 = vmatpush2.bf16.msra.mxu0 0
        %705 = vmatprep.subr.bf16.mxu0 0
        %706 = vmatpush2.bf16.msra.mxu0 0
        %707 = vmatprep.mubr.bf16.mxu0 0
        %708 = vmatmul.mubr.bf16.gmra.mxu0 %v673
        %v709 = vpop.f32.mrf.mxu0
        %v710 = vadd.f32 %v369, %v709
        %v711 = vpop.f32.mrf.mxu0
        %v712 = vpop.f32.mrf.mxu0
        %v713 = vadd.f32 %v370, %v712
        %v714 = vpop.f32.mrf.mxu0
        %715 = vmatprep.mubr.bf16.mxu0 0
        %716 = vmatmul.mubr.bf16.gmra.mxu0 %v674
        %v717 = vpop.f32.mrf.mxu0
        %v718 = vadd.f32 %v371, %v717
        %v719 = vpop.f32.mrf.mxu0
        %v720 = vpop.f32.mrf.mxu0
        %v721 = vadd.f32 %v372, %v720
        %v722 = vpop.f32.mrf.mxu0
        %723 = vdwg.mxu0
        %v724 = vld [vmem:[%s322 + $0x1] sm:$0x1]
        %v725 = vlaneseq
        %v726 = vshrl.u32 %v725, 7
        %v727 = vsub.s32 0, %v726
        %v728 = vrot.slane %v724, %v727
        %v729 = vadd.f32 %v710, %v728
        %v730 = vadd.f32 %v713, %v728
        %v731 = vadd.f32 %v718, %v728
        %v732 = vadd.f32 %v721, %v728
        %v733 = vxor.u32 %v729, 2147483648
        %v734 = vxor.u32 %v730, 2147483648
        %v735 = vxor.u32 %v731, 2147483648
        %v736 = vxor.u32 %v732, 2147483648
        %v737 = vmul.f32 %v733, 1.442695
        %v738 = vpow.pop %v737
        %v739 = vmul.f32 %v734, 1.442695
        %v740 = vpow.pop %v739
        %v741 = vmul.f32 %v735, 1.442695
        %v742 = vpow.pop %v741
        %v743 = vmul.f32 %v736, 1.442695
        %v744 = vpow.pop %v743
        %v745 = vadd.f32 %v738, 1.0
        %v746 = vadd.f32 %v740, 1.0
        %v747 = vadd.f32 %v742, 1.0
        %v748 = vadd.f32 %v744, 1.0
        %v749 = vrcp.pop %v745
        %v750 = vmul.f32 1.0, %v749
        %v751 = vrcp.pop %v746
        %v752 = vmul.f32 1.0, %v751
        %v753 = vrcp.pop %v747
        %v754 = vmul.f32 1.0, %v753
        %v755 = vrcp.pop %v748
        %v756 = vmul.f32 1.0, %v755
        %v757 = vmul.f32 %v729, %v750
        %v758 = vmul.f32 %v730, %v752
        %v759 = vmul.f32 %v731, %v754
        %v760 = vmul.f32 %v732, %v756
        %v761 = vpack.c.bf16 %v758, %v757
        %v762 = vpack.c.bf16 %v760, %v759
        %763 = vmatprep.subr.bf16.mxu0 0
        %764 = vmatpush1.bf16.msra.mxu0 %v574
        %765 = vmatprep.subr.bf16.mxu0 0
        %766 = vmatpush1.bf16.msra.mxu0 %v573
        %767 = vmatprep.subr.bf16.mxu0 0
        %768 = vmatpush1.bf16.msra.mxu0 %v572
        %769 = vmatprep.subr.bf16.mxu0 0
        %770 = vmatpush1.bf16.msra.mxu0 %v571
        %771 = vmatprep.subr.bf16.mxu0 0
        %772 = vmatpush1.bf16.msra.mxu0 %v570
        %773 = vmatprep.subr.bf16.mxu0 0
        %774 = vmatpush1.bf16.msra.mxu0 %v569
        %775 = vmatprep.subr.bf16.mxu0 0
        %776 = vmatpush1.bf16.msra.mxu0 %v568
        %777 = vmatprep.subr.bf16.mxu0 0
        %778 = vmatpush1.bf16.msra.mxu0 %v567
        %779 = vmatprep.subr.bf16.mxu0 0
        %780 = vmatpush2.bf16.msra.mxu0 0
        %781 = vmatprep.subr.bf16.mxu0 0
        %782 = vmatpush2.bf16.msra.mxu0 0
        %783 = vmatprep.subr.bf16.mxu0 0
        %784 = vmatpush2.bf16.msra.mxu0 0
        %785 = vmatprep.subr.bf16.mxu0 0
        %786 = vmatpush2.bf16.msra.mxu0 0
        %787 = vmatprep.subr.bf16.mxu0 0
        %788 = vmatpush2.bf16.msra.mxu0 0
        %789 = vmatprep.subr.bf16.mxu0 0
        %790 = vmatpush2.bf16.msra.mxu0 0
        %791 = vmatprep.subr.bf16.mxu0 0
        %792 = vmatpush2.bf16.msra.mxu0 0
        %793 = vmatprep.subr.bf16.mxu0 0
        %794 = vmatpush2.bf16.msra.mxu0 0
        %795 = vmatprep.mubr.bf16.mxu0 0
        %796 = vmatmul.mubr.bf16.gmra.mxu0 %v761
        %v797 = vpop.f32.mrf.mxu0
        %v798 = vadd.f32 %v533, %v797
        %v799 = vpop.f32.mrf.mxu0
        %v800 = vpop.f32.mrf.mxu0
        %v801 = vadd.f32 %v533, %v800
        %v802 = vpop.f32.mrf.mxu0
        %803 = vmatprep.mubr.bf16.mxu0 0
        %804 = vmatmul.mubr.bf16.gmra.mxu0 %v762
        %v805 = vpop.f32.mrf.mxu0
        %v806 = vadd.f32 %v533, %v805
        %v807 = vpop.f32.mrf.mxu0
        %v808 = vpop.f32.mrf.mxu0
        %v809 = vadd.f32 %v533, %v808
        %v810 = vpop.f32.mrf.mxu0
        %811 = vdwg.mxu0
        %v812 = vstv %s668
        %v813 = vmul.f32 %v812, %v798
        %v814 = vmul.f32 %v812, %v801
        %v815 = vmul.f32 %v812, %v806
        %v816 = vmul.f32 %v812, %v809
        %v817 = vsub.f32 %v655, %v813
        %v818 = vsub.f32 %v656, %v814
        %v819 = vsub.f32 %v657, %v815
        %v820 = vsub.f32 %v658, %v816
        %v821 = vstv %s660
        %v822 = vmul.f32 %v821, %v817
        %v823 = vmul.f32 %v821, %v818
        %v824 = vmul.f32 %v821, %v819
        %v825 = vmul.f32 %v821, %v820
        %s826 = scalar_lea.vmem %s318, 32
        %v827 = vld [vmem:[%s826] sm:$0xff]
        %v828 = vld [vmem:[%s826 + $0x8] sm:$0xff]
        %v829 = vld [vmem:[%s826 + $0x10] sm:$0xff]
        %v830 = vld [vmem:[%s826 + $0x18] sm:$0xff]
        %v831 = vstv %s672
        %v832 = vmul.f32 %v831, %v827
        %v833 = vmul.f32 %v831, %v828
        %v834 = vmul.f32 %v831, %v829
        %v835 = vmul.f32 %v831, %v830
        %v836 = vadd.f32 %v822, %v832
        %v837 = vadd.f32 %v823, %v833
        %v838 = vadd.f32 %v824, %v834
        %v839 = vadd.f32 %v825, %v835
        %s840 = sadd.s32 %s377, 2
        %s841 = sld [smem:[#allocation2 + %s840]]
        %s842 = sshra.s32 %s840, 7
        %s843 = sand.u32 %s840, 127
        %s844 = sadd.s32 %s842, 1
        %s845 = smul.u32 %s844, 128
        %s846 = sshra.s32 %s840, 7
        %s847 = sand.u32 %s840, 127
        %s848 = sadd.s32 %s845, %s847
        %s849 = sld [smem:[#allocation2 + %s848]]
        %s850 = sadd.s32 %s842, 2
        %s851 = smul.u32 %s850, 128
        %s852 = sadd.s32 %s851, %s847
        %s853 = sld [smem:[#allocation2 + %s852]]
        %v854 = vpack.c.bf16 %v837, %v836
        %v855 = vpack.c.bf16 %v839, %v838
        %856 = vmatprep.subr.bf16.mxu0 0
        %857 = vmatpush1.bf16.msra.mxu0 %v432
        %858 = vmatprep.subr.bf16.mxu0 0
        %859 = vmatpush1.bf16.msra.mxu0 %v431
        %860 = vmatprep.subr.bf16.mxu0 0
        %861 = vmatpush1.bf16.msra.mxu0 %v430
        %862 = vmatprep.subr.bf16.mxu0 0
        %863 = vmatpush1.bf16.msra.mxu0 %v429
        %864 = vmatprep.subr.bf16.mxu0 0
        %865 = vmatpush1.bf16.msra.mxu0 %v428
        %866 = vmatprep.subr.bf16.mxu0 0
        %867 = vmatpush1.bf16.msra.mxu0 %v427
        %868 = vmatprep.subr.bf16.mxu0 0
        %869 = vmatpush1.bf16.msra.mxu0 %v426
        %870 = vmatprep.subr.bf16.mxu0 0
        %871 = vmatpush1.bf16.msra.mxu0 %v425
        %872 = vmatprep.subr.bf16.mxu0 0
        %873 = vmatpush2.bf16.msra.mxu0 0
        %874 = vmatprep.subr.bf16.mxu0 0
        %875 = vmatpush2.bf16.msra.mxu0 0
        %876 = vmatprep.subr.bf16.mxu0 0
        %877 = vmatpush2.bf16.msra.mxu0 0
        %878 = vmatprep.subr.bf16.mxu0 0
        %879 = vmatpush2.bf16.msra.mxu0 0
        %880 = vmatprep.subr.bf16.mxu0 0
        %881 = vmatpush2.bf16.msra.mxu0 0
        %882 = vmatprep.subr.bf16.mxu0 0
        %883 = vmatpush2.bf16.msra.mxu0 0
        %884 = vmatprep.subr.bf16.mxu0 0
        %885 = vmatpush2.bf16.msra.mxu0 0
        %886 = vmatprep.subr.bf16.mxu0 0
        %887 = vmatpush2.bf16.msra.mxu0 0
        %888 = vmatprep.mubr.bf16.mxu0 0
        %889 = vmatmul.mubr.bf16.gmra.mxu0 %v854
        %v890 = vpop.f32.mrf.mxu0
        %v891 = vadd.f32 %v369, %v890
        %v892 = vpop.f32.mrf.mxu0
        %v893 = vpop.f32.mrf.mxu0
        %v894 = vadd.f32 %v370, %v893
        %v895 = vpop.f32.mrf.mxu0
        %896 = vmatprep.mubr.bf16.mxu0 0
        %897 = vmatmul.mubr.bf16.gmra.mxu0 %v855
        %v898 = vpop.f32.mrf.mxu0
        %v899 = vadd.f32 %v371, %v898
        %v900 = vpop.f32.mrf.mxu0
        %v901 = vpop.f32.mrf.mxu0
        %v902 = vadd.f32 %v372, %v901
        %v903 = vpop.f32.mrf.mxu0
        %904 = vdwg.mxu0
        %v905 = vld [vmem:[%s322 + $0x2] sm:$0x1]
        %v906 = vlaneseq
        %v907 = vshrl.u32 %v906, 7
        %v908 = vsub.s32 0, %v907
        %v909 = vrot.slane %v905, %v908
        %v910 = vadd.f32 %v891, %v909
        %v911 = vadd.f32 %v894, %v909
        %v912 = vadd.f32 %v899, %v909
        %v913 = vadd.f32 %v902, %v909
        %v914 = vxor.u32 %v910, 2147483648
        %v915 = vxor.u32 %v911, 2147483648
        %v916 = vxor.u32 %v912, 2147483648
        %v917 = vxor.u32 %v913, 2147483648
        %v918 = vmul.f32 %v914, 1.442695
        %v919 = vpow.pop %v918
        %v920 = vmul.f32 %v915, 1.442695
        %v921 = vpow.pop %v920
        %v922 = vmul.f32 %v916, 1.442695
        %v923 = vpow.pop %v922
        %v924 = vmul.f32 %v917, 1.442695
        %v925 = vpow.pop %v924
        %v926 = vadd.f32 %v919, 1.0
        %v927 = vadd.f32 %v921, 1.0
        %v928 = vadd.f32 %v923, 1.0
        %v929 = vadd.f32 %v925, 1.0
        %v930 = vrcp.pop %v926
        %v931 = vmul.f32 1.0, %v930
        %v932 = vrcp.pop %v927
        %v933 = vmul.f32 1.0, %v932
        %v934 = vrcp.pop %v928
        %v935 = vmul.f32 1.0, %v934
        %v936 = vrcp.pop %v929
        %v937 = vmul.f32 1.0, %v936
        %v938 = vmul.f32 %v910, %v931
        %v939 = vmul.f32 %v911, %v933
        %v940 = vmul.f32 %v912, %v935
        %v941 = vmul.f32 %v913, %v937
        %v942 = vpack.c.bf16 %v939, %v938
        %v943 = vpack.c.bf16 %v941, %v940
        %944 = vmatprep.subr.bf16.mxu0 0
        %945 = vmatpush1.bf16.msra.mxu0 %v574
        %946 = vmatprep.subr.bf16.mxu0 0
        %947 = vmatpush1.bf16.msra.mxu0 %v573
        %948 = vmatprep.subr.bf16.mxu0 0
        %949 = vmatpush1.bf16.msra.mxu0 %v572
        %950 = vmatprep.subr.bf16.mxu0 0
        %951 = vmatpush1.bf16.msra.mxu0 %v571
        %952 = vmatprep.subr.bf16.mxu0 0
        %953 = vmatpush1.bf16.msra.mxu0 %v570
        %954 = vmatprep.subr.bf16.mxu0 0
        %955 = vmatpush1.bf16.msra.mxu0 %v569
        %956 = vmatprep.subr.bf16.mxu0 0
        %957 = vmatpush1.bf16.msra.mxu0 %v568
        %958 = vmatprep.subr.bf16.mxu0 0
        %959 = vmatpush1.bf16.msra.mxu0 %v567
        %960 = vmatprep.subr.bf16.mxu0 0
        %961 = vmatpush2.bf16.msra.mxu0 0
        %962 = vmatprep.subr.bf16.mxu0 0
        %963 = vmatpush2.bf16.msra.mxu0 0
        %964 = vmatprep.subr.bf16.mxu0 0
        %965 = vmatpush2.bf16.msra.mxu0 0
        %966 = vmatprep.subr.bf16.mxu0 0
        %967 = vmatpush2.bf16.msra.mxu0 0
        %968 = vmatprep.subr.bf16.mxu0 0
        %969 = vmatpush2.bf16.msra.mxu0 0
        %970 = vmatprep.subr.bf16.mxu0 0
        %971 = vmatpush2.bf16.msra.mxu0 0
        %972 = vmatprep.subr.bf16.mxu0 0
        %973 = vmatpush2.bf16.msra.mxu0 0
        %974 = vmatprep.subr.bf16.mxu0 0
        %975 = vmatpush2.bf16.msra.mxu0 0
        %976 = vmatprep.mubr.bf16.mxu0 0
        %977 = vmatmul.mubr.bf16.gmra.mxu0 %v942
        %v978 = vpop.f32.mrf.mxu0
        %v979 = vadd.f32 %v533, %v978
        %v980 = vpop.f32.mrf.mxu0
        %v981 = vpop.f32.mrf.mxu0
        %v982 = vadd.f32 %v533, %v981
        %v983 = vpop.f32.mrf.mxu0
        %984 = vmatprep.mubr.bf16.mxu0 0
        %985 = vmatmul.mubr.bf16.gmra.mxu0 %v943
        %v986 = vpop.f32.mrf.mxu0
        %v987 = vadd.f32 %v533, %v986
        %v988 = vpop.f32.mrf.mxu0
        %v989 = vpop.f32.mrf.mxu0
        %v990 = vadd.f32 %v533, %v989
        %v991 = vpop.f32.mrf.mxu0
        %992 = vdwg.mxu0
        %v993 = vstv %s849
        %v994 = vmul.f32 %v993, %v979
        %v995 = vmul.f32 %v993, %v982
        %v996 = vmul.f32 %v993, %v987
        %v997 = vmul.f32 %v993, %v990
        %v998 = vsub.f32 %v836, %v994
        %v999 = vsub.f32 %v837, %v995
        %v1000 = vsub.f32 %v838, %v996
        %v1001 = vsub.f32 %v839, %v997
        %v1002 = vstv %s841
        %v1003 = vmul.f32 %v1002, %v998
        %v1004 = vmul.f32 %v1002, %v999
        %v1005 = vmul.f32 %v1002, %v1000
        %v1006 = vmul.f32 %v1002, %v1001
        %s1007 = scalar_lea.vmem %s318, 64
        %v1008 = vld [vmem:[%s1007] sm:$0xff]
        %v1009 = vld [vmem:[%s1007 + $0x8] sm:$0xff]
        %v1010 = vld [vmem:[%s1007 + $0x10] sm:$0xff]
        %v1011 = vld [vmem:[%s1007 + $0x18] sm:$0xff]
        %v1012 = vstv %s853
        %v1013 = vmul.f32 %v1012, %v1008
        %v1014 = vmul.f32 %v1012, %v1009
        %v1015 = vmul.f32 %v1012, %v1010
        %v1016 = vmul.f32 %v1012, %v1011
        %v1017 = vadd.f32 %v1003, %v1013
        %v1018 = vadd.f32 %v1004, %v1014
        %v1019 = vadd.f32 %v1005, %v1015
        %v1020 = vadd.f32 %v1006, %v1016
        %s1021 = sadd.s32 %s377, 3
        %s1022 = sld [smem:[#allocation2 + %s1021]]
        %s1023 = sshra.s32 %s1021, 7
        %s1024 = sand.u32 %s1021, 127
        %s1025 = sadd.s32 %s1023, 1
        %s1026 = smul.u32 %s1025, 128
        %s1027 = sshra.s32 %s1021, 7
        %s1028 = sand.u32 %s1021, 127
        %s1029 = sadd.s32 %s1026, %s1028
        %s1030 = sld [smem:[#allocation2 + %s1029]]
        %s1031 = sadd.s32 %s1023, 2
        %s1032 = smul.u32 %s1031, 128
        %s1033 = sadd.s32 %s1032, %s1028
        %s1034 = sld [smem:[#allocation2 + %s1033]]
        %v1035 = vpack.c.bf16 %v1018, %v1017
        %v1036 = vpack.c.bf16 %v1020, %v1019
        %1037 = vmatprep.subr.bf16.mxu0 0
        %1038 = vmatpush1.bf16.msra.mxu0 %v432
        %1039 = vmatprep.subr.bf16.mxu0 0
        %1040 = vmatpush1.bf16.msra.mxu0 %v431
        %1041 = vmatprep.subr.bf16.mxu0 0
        %1042 = vmatpush1.bf16.msra.mxu0 %v430
        %1043 = vmatprep.subr.bf16.mxu0 0
        %1044 = vmatpush1.bf16.msra.mxu0 %v429
        %1045 = vmatprep.subr.bf16.mxu0 0
        %1046 = vmatpush1.bf16.msra.mxu0 %v428
        %1047 = vmatprep.subr.bf16.mxu0 0
        %1048 = vmatpush1.bf16.msra.mxu0 %v427
        %1049 = vmatprep.subr.bf16.mxu0 0
        %1050 = vmatpush1.bf16.msra.mxu0 %v426
        %1051 = vmatprep.subr.bf16.mxu0 0
        %1052 = vmatpush1.bf16.msra.mxu0 %v425
        %1053 = vmatprep.subr.bf16.mxu0 0
        %1054 = vmatpush2.bf16.msra.mxu0 0
        %1055 = vmatprep.subr.bf16.mxu0 0
        %1056 = vmatpush2.bf16.msra.mxu0 0
        %1057 = vmatprep.subr.bf16.mxu0 0
        %1058 = vmatpush2.bf16.msra.mxu0 0
        %1059 = vmatprep.subr.bf16.mxu0 0
        %1060 = vmatpush2.bf16.msra.mxu0 0
        %1061 = vmatprep.subr.bf16.mxu0 0
        %1062 = vmatpush2.bf16.msra.mxu0 0
        %1063 = vmatprep.subr.bf16.mxu0 0
        %1064 = vmatpush2.bf16.msra.mxu0 0
        %1065 = vmatprep.subr.bf16.mxu0 0
        %1066 = vmatpush2.bf16.msra.mxu0 0
        %1067 = vmatprep.subr.bf16.mxu0 0
        %1068 = vmatpush2.bf16.msra.mxu0 0
        %1069 = vmatprep.mubr.bf16.mxu0 0
        %1070 = vmatmul.mubr.bf16.gmra.mxu0 %v1035
        %v1071 = vpop.f32.mrf.mxu0
        %v1072 = vadd.f32 %v369, %v1071
        %v1073 = vpop.f32.mrf.mxu0
        %v1074 = vpop.f32.mrf.mxu0
        %v1075 = vadd.f32 %v370, %v1074
        %v1076 = vpop.f32.mrf.mxu0
        %1077 = vmatprep.mubr.bf16.mxu0 0
        %1078 = vmatmul.mubr.bf16.gmra.mxu0 %v1036
        %v1079 = vpop.f32.mrf.mxu0
        %v1080 = vadd.f32 %v371, %v1079
        %v1081 = vpop.f32.mrf.mxu0
        %v1082 = vpop.f32.mrf.mxu0
        %v1083 = vadd.f32 %v372, %v1082
        %v1084 = vpop.f32.mrf.mxu0
        %1085 = vdwg.mxu0
        %v1086 = vld [vmem:[%s322 + $0x3] sm:$0x1]
        %v1087 = vlaneseq
        %v1088 = vshrl.u32 %v1087, 7
        %v1089 = vsub.s32 0, %v1088
        %v1090 = vrot.slane %v1086, %v1089
        %v1091 = vadd.f32 %v1072, %v1090
        %v1092 = vadd.f32 %v1075, %v1090
        %v1093 = vadd.f32 %v1080, %v1090
        %v1094 = vadd.f32 %v1083, %v1090
        %v1095 = vxor.u32 %v1091, 2147483648
        %v1096 = vxor.u32 %v1092, 2147483648
        %v1097 = vxor.u32 %v1093, 2147483648
        %v1098 = vxor.u32 %v1094, 2147483648
        %v1099 = vmul.f32 %v1095, 1.442695
        %v1100 = vpow.pop %v1099
        %v1101 = vmul.f32 %v1096, 1.442695
        %v1102 = vpow.pop %v1101
        %v1103 = vmul.f32 %v1097, 1.442695
        %v1104 = vpow.pop %v1103
        %v1105 = vmul.f32 %v1098, 1.442695
        %v1106 = vpow.pop %v1105
        %v1107 = vadd.f32 %v1100, 1.0
        %v1108 = vadd.f32 %v1102, 1.0
        %v1109 = vadd.f32 %v1104, 1.0
        %v1110 = vadd.f32 %v1106, 1.0
        %v1111 = vrcp.pop %v1107
        %v1112 = vmul.f32 1.0, %v1111
        %v1113 = vrcp.pop %v1108
        %v1114 = vmul.f32 1.0, %v1113
        %v1115 = vrcp.pop %v1109
        %v1116 = vmul.f32 1.0, %v1115
        %v1117 = vrcp.pop %v1110
        %v1118 = vmul.f32 1.0, %v1117
        %v1119 = vmul.f32 %v1091, %v1112
        %v1120 = vmul.f32 %v1092, %v1114
        %v1121 = vmul.f32 %v1093, %v1116
        %v1122 = vmul.f32 %v1094, %v1118
        %v1123 = vpack.c.bf16 %v1120, %v1119
        %v1124 = vpack.c.bf16 %v1122, %v1121
        %1125 = vmatprep.subr.bf16.mxu0 0
        %1126 = vmatpush1.bf16.msra.mxu0 %v574
        %1127 = vmatprep.subr.bf16.mxu0 0
        %1128 = vmatpush1.bf16.msra.mxu0 %v573
        %1129 = vmatprep.subr.bf16.mxu0 0
        %1130 = vmatpush1.bf16.msra.mxu0 %v572
        %1131 = vmatprep.subr.bf16.mxu0 0
        %1132 = vmatpush1.bf16.msra.mxu0 %v571
        %1133 = vmatprep.subr.bf16.mxu0 0
        %1134 = vmatpush1.bf16.msra.mxu0 %v570
        %1135 = vmatprep.subr.bf16.mxu0 0
        %1136 = vmatpush1.bf16.msra.mxu0 %v569
        %1137 = vmatprep.subr.bf16.mxu0 0
        %1138 = vmatpush1.bf16.msra.mxu0 %v568
        %1139 = vmatprep.subr.bf16.mxu0 0
        %1140 = vmatpush1.bf16.msra.mxu0 %v567
        %1141 = vmatprep.subr.bf16.mxu0 0
        %1142 = vmatpush2.bf16.msra.mxu0 0
        %1143 = vmatprep.subr.bf16.mxu0 0
        %1144 = vmatpush2.bf16.msra.mxu0 0
        %1145 = vmatprep.subr.bf16.mxu0 0
        %1146 = vmatpush2.bf16.msra.mxu0 0
        %1147 = vmatprep.subr.bf16.mxu0 0
        %1148 = vmatpush2.bf16.msra.mxu0 0
        %1149 = vmatprep.subr.bf16.mxu0 0
        %1150 = vmatpush2.bf16.msra.mxu0 0
        %1151 = vmatprep.subr.bf16.mxu0 0
        %1152 = vmatpush2.bf16.msra.mxu0 0
        %1153 = vmatprep.subr.bf16.mxu0 0
        %1154 = vmatpush2.bf16.msra.mxu0 0
        %1155 = vmatprep.subr.bf16.mxu0 0
        %1156 = vmatpush2.bf16.msra.mxu0 0
        %1157 = vmatprep.mubr.bf16.mxu0 0
        %1158 = vmatmul.mubr.bf16.gmra.mxu0 %v1123
        %v1159 = vpop.f32.mrf.mxu0
        %v1160 = vadd.f32 %v533, %v1159
        %v1161 = vpop.f32.mrf.mxu0
        %v1162 = vpop.f32.mrf.mxu0
        %v1163 = vadd.f32 %v533, %v1162
        %v1164 = vpop.f32.mrf.mxu0
        %1165 = vmatprep.mubr.bf16.mxu0 0
        %1166 = vmatmul.mubr.bf16.gmra.mxu0 %v1124
        %v1167 = vpop.f32.mrf.mxu0
        %v1168 = vadd.f32 %v533, %v1167
        %v1169 = vpop.f32.mrf.mxu0
        %v1170 = vpop.f32.mrf.mxu0
        %v1171 = vadd.f32 %v533, %v1170
        %v1172 = vpop.f32.mrf.mxu0
        %1173 = vdwg.mxu0
        %v1174 = vstv %s1030
        %v1175 = vmul.f32 %v1174, %v1160
        %v1176 = vmul.f32 %v1174, %v1163
        %v1177 = vmul.f32 %v1174, %v1168
        %v1178 = vmul.f32 %v1174, %v1171
        %v1179 = vsub.f32 %v1017, %v1175
        %v1180 = vsub.f32 %v1018, %v1176
        %v1181 = vsub.f32 %v1019, %v1177
        %v1182 = vsub.f32 %v1020, %v1178
        %v1183 = vstv %s1022
        %v1184 = vmul.f32 %v1183, %v1179
        %v1185 = vmul.f32 %v1183, %v1180
        %v1186 = vmul.f32 %v1183, %v1181
        %v1187 = vmul.f32 %v1183, %v1182
        %s1188 = scalar_lea.vmem %s318, 96
        %v1189 = vld [vmem:[%s1188] sm:$0xff]
        %v1190 = vld [vmem:[%s1188 + $0x8] sm:$0xff]
        %v1191 = vld [vmem:[%s1188 + $0x10] sm:$0xff]
        %v1192 = vld [vmem:[%s1188 + $0x18] sm:$0xff]
        %v1193 = vstv %s1034
        %v1194 = vmul.f32 %v1193, %v1189
        %v1195 = vmul.f32 %v1193, %v1190
        %v1196 = vmul.f32 %v1193, %v1191
        %v1197 = vmul.f32 %v1193, %v1192
        %v1198 = vadd.f32 %v1184, %v1194
        %v1199 = vadd.f32 %v1185, %v1195
        %v1200 = vadd.f32 %v1186, %v1196
        %v1201 = vadd.f32 %v1187, %v1197
        %s1202 = sadd.s32 %s377, 4
        %s1203 = sld [smem:[#allocation2 + %s1202]]
        %s1204 = sshra.s32 %s1202, 7
        %s1205 = sand.u32 %s1202, 127
        %s1206 = sadd.s32 %s1204, 1
        %s1207 = smul.u32 %s1206, 128
        %s1208 = sshra.s32 %s1202, 7
        %s1209 = sand.u32 %s1202, 127
        %s1210 = sadd.s32 %s1207, %s1209
        %s1211 = sld [smem:[#allocation2 + %s1210]]
        %s1212 = sadd.s32 %s1204, 2
        %s1213 = smul.u32 %s1212, 128
        %s1214 = sadd.s32 %s1213, %s1209
        %s1215 = sld [smem:[#allocation2 + %s1214]]
        %v1216 = vpack.c.bf16 %v1199, %v1198
        %v1217 = vpack.c.bf16 %v1201, %v1200
        %1218 = vmatprep.subr.bf16.mxu0 0
        %1219 = vmatpush1.bf16.msra.mxu0 %v432
        %1220 = vmatprep.subr.bf16.mxu0 0
        %1221 = vmatpush1.bf16.msra.mxu0 %v431
        %1222 = vmatprep.subr.bf16.mxu0 0
        %1223 = vmatpush1.bf16.msra.mxu0 %v430
        %1224 = vmatprep.subr.bf16.mxu0 0
        %1225 = vmatpush1.bf16.msra.mxu0 %v429
        %1226 = vmatprep.subr.bf16.mxu0 0
        %1227 = vmatpush1.bf16.msra.mxu0 %v428
        %1228 = vmatprep.subr.bf16.mxu0 0
        %1229 = vmatpush1.bf16.msra.mxu0 %v427
        %1230 = vmatprep.subr.bf16.mxu0 0
        %1231 = vmatpush1.bf16.msra.mxu0 %v426
        %1232 = vmatprep.subr.bf16.mxu0 0
        %1233 = vmatpush1.bf16.msra.mxu0 %v425
        %1234 = vmatprep.subr.bf16.mxu0 0
        %1235 = vmatpush2.bf16.msra.mxu0 0
        %1236 = vmatprep.subr.bf16.mxu0 0
        %1237 = vmatpush2.bf16.msra.mxu0 0
        %1238 = vmatprep.subr.bf16.mxu0 0
        %1239 = vmatpush2.bf16.msra.mxu0 0
        %1240 = vmatprep.subr.bf16.mxu0 0
        %1241 = vmatpush2.bf16.msra.mxu0 0
        %1242 = vmatprep.subr.bf16.mxu0 0
        %1243 = vmatpush2.bf16.msra.mxu0 0
        %1244 = vmatprep.subr.bf16.mxu0 0
        %1245 = vmatpush2.bf16.msra.mxu0 0
        %1246 = vmatprep.subr.bf16.mxu0 0
        %1247 = vmatpush2.bf16.msra.mxu0 0
        %1248 = vmatprep.subr.bf16.mxu0 0
        %1249 = vmatpush2.bf16.msra.mxu0 0
        %1250 = vmatprep.mubr.bf16.mxu0 0
        %1251 = vmatmul.mubr.bf16.gmra.mxu0 %v1216
        %v1252 = vpop.f32.mrf.mxu0
        %v1253 = vadd.f32 %v369, %v1252
        %v1254 = vpop.f32.mrf.mxu0
        %v1255 = vpop.f32.mrf.mxu0
        %v1256 = vadd.f32 %v370, %v1255
        %v1257 = vpop.f32.mrf.mxu0
        %1258 = vmatprep.mubr.bf16.mxu0 0
        %1259 = vmatmul.mubr.bf16.gmra.mxu0 %v1217
        %v1260 = vpop.f32.mrf.mxu0
        %v1261 = vadd.f32 %v371, %v1260
        %v1262 = vpop.f32.mrf.mxu0
        %v1263 = vpop.f32.mrf.mxu0
        %v1264 = vadd.f32 %v372, %v1263
        %v1265 = vpop.f32.mrf.mxu0
        %1266 = vdwg.mxu0
        %v1267 = vld [vmem:[%s322 + $0x4] sm:$0x1]
        %v1268 = vlaneseq
        %v1269 = vshrl.u32 %v1268, 7
        %v1270 = vsub.s32 0, %v1269
        %v1271 = vrot.slane %v1267, %v1270
        %v1272 = vadd.f32 %v1253, %v1271
        %v1273 = vadd.f32 %v1256, %v1271
        %v1274 = vadd.f32 %v1261, %v1271
        %v1275 = vadd.f32 %v1264, %v1271
        %v1276 = vxor.u32 %v1272, 2147483648
        %v1277 = vxor.u32 %v1273, 2147483648
        %v1278 = vxor.u32 %v1274, 2147483648
        %v1279 = vxor.u32 %v1275, 2147483648
        %v1280 = vmul.f32 %v1276, 1.442695
        %v1281 = vpow.pop %v1280
        %v1282 = vmul.f32 %v1277, 1.442695
        %v1283 = vpow.pop %v1282
        %v1284 = vmul.f32 %v1278, 1.442695
        %v1285 = vpow.pop %v1284
        %v1286 = vmul.f32 %v1279, 1.442695
        %v1287 = vpow.pop %v1286
        %v1288 = vadd.f32 %v1281, 1.0
        %v1289 = vadd.f32 %v1283, 1.0
        %v1290 = vadd.f32 %v1285, 1.0
        %v1291 = vadd.f32 %v1287, 1.0
        %v1292 = vrcp.pop %v1288
        %v1293 = vmul.f32 1.0, %v1292
        %v1294 = vrcp.pop %v1289
        %v1295 = vmul.f32 1.0, %v1294
        %v1296 = vrcp.pop %v1290
        %v1297 = vmul.f32 1.0, %v1296
        %v1298 = vrcp.pop %v1291
        %v1299 = vmul.f32 1.0, %v1298
        %v1300 = vmul.f32 %v1272, %v1293
        %v1301 = vmul.f32 %v1273, %v1295
        %v1302 = vmul.f32 %v1274, %v1297
        %v1303 = vmul.f32 %v1275, %v1299
        %v1304 = vpack.c.bf16 %v1301, %v1300
        %v1305 = vpack.c.bf16 %v1303, %v1302
        %1306 = vmatprep.subr.bf16.mxu0 0
        %1307 = vmatpush1.bf16.msra.mxu0 %v574
        %1308 = vmatprep.subr.bf16.mxu0 0
        %1309 = vmatpush1.bf16.msra.mxu0 %v573
        %1310 = vmatprep.subr.bf16.mxu0 0
        %1311 = vmatpush1.bf16.msra.mxu0 %v572
        %1312 = vmatprep.subr.bf16.mxu0 0
        %1313 = vmatpush1.bf16.msra.mxu0 %v571
        %1314 = vmatprep.subr.bf16.mxu0 0
        %1315 = vmatpush1.bf16.msra.mxu0 %v570
        %1316 = vmatprep.subr.bf16.mxu0 0
        %1317 = vmatpush1.bf16.msra.mxu0 %v569
        %1318 = vmatprep.subr.bf16.mxu0 0
        %1319 = vmatpush1.bf16.msra.mxu0 %v568
        %1320 = vmatprep.subr.bf16.mxu0 0
        %1321 = vmatpush1.bf16.msra.mxu0 %v567
        %1322 = vmatprep.subr.bf16.mxu0 0
        %1323 = vmatpush2.bf16.msra.mxu0 0
        %1324 = vmatprep.subr.bf16.mxu0 0
        %1325 = vmatpush2.bf16.msra.mxu0 0
        %1326 = vmatprep.subr.bf16.mxu0 0
        %1327 = vmatpush2.bf16.msra.mxu0 0
        %1328 = vmatprep.subr.bf16.mxu0 0
        %1329 = vmatpush2.bf16.msra.mxu0 0
        %1330 = vmatprep.subr.bf16.mxu0 0
        %1331 = vmatpush2.bf16.msra.mxu0 0
        %1332 = vmatprep.subr.bf16.mxu0 0
        %1333 = vmatpush2.bf16.msra.mxu0 0
        %1334 = vmatprep.subr.bf16.mxu0 0
        %1335 = vmatpush2.bf16.msra.mxu0 0
        %1336 = vmatprep.subr.bf16.mxu0 0
        %1337 = vmatpush2.bf16.msra.mxu0 0
        %1338 = vmatprep.mubr.bf16.mxu0 0
        %1339 = vmatmul.mubr.bf16.gmra.mxu0 %v1304
        %v1340 = vpop.f32.mrf.mxu0
        %v1341 = vadd.f32 %v533, %v1340
        %v1342 = vpop.f32.mrf.mxu0
        %v1343 = vpop.f32.mrf.mxu0
        %v1344 = vadd.f32 %v533, %v1343
        %v1345 = vpop.f32.mrf.mxu0
        %1346 = vmatprep.mubr.bf16.mxu0 0
        %1347 = vmatmul.mubr.bf16.gmra.mxu0 %v1305
        %v1348 = vpop.f32.mrf.mxu0
        %v1349 = vadd.f32 %v533, %v1348
        %v1350 = vpop.f32.mrf.mxu0
        %v1351 = vpop.f32.mrf.mxu0
        %v1352 = vadd.f32 %v533, %v1351
        %v1353 = vpop.f32.mrf.mxu0
        %1354 = vdwg.mxu0
        %v1355 = vstv %s1211
        %v1356 = vmul.f32 %v1355, %v1341
        %v1357 = vmul.f32 %v1355, %v1344
        %v1358 = vmul.f32 %v1355, %v1349
        %v1359 = vmul.f32 %v1355, %v1352
        %v1360 = vsub.f32 %v1198, %v1356
        %v1361 = vsub.f32 %v1199, %v1357
        %v1362 = vsub.f32 %v1200, %v1358
        %v1363 = vsub.f32 %v1201, %v1359
        %v1364 = vstv %s1203
        %v1365 = vmul.f32 %v1364, %v1360
        %v1366 = vmul.f32 %v1364, %v1361
        %v1367 = vmul.f32 %v1364, %v1362
        %v1368 = vmul.f32 %v1364, %v1363
        %s1369 = scalar_lea.vmem %s318, 128
        %v1370 = vld [vmem:[%s1369] sm:$0xff]
        %v1371 = vld [vmem:[%s1369 + $0x8] sm:$0xff]
        %v1372 = vld [vmem:[%s1369 + $0x10] sm:$0xff]
        %v1373 = vld [vmem:[%s1369 + $0x18] sm:$0xff]
        %v1374 = vstv %s1215
        %v1375 = vmul.f32 %v1374, %v1370
        %v1376 = vmul.f32 %v1374, %v1371
        %v1377 = vmul.f32 %v1374, %v1372
        %v1378 = vmul.f32 %v1374, %v1373
        %v1379 = vadd.f32 %v1365, %v1375
        %v1380 = vadd.f32 %v1366, %v1376
        %v1381 = vadd.f32 %v1367, %v1377
        %v1382 = vadd.f32 %v1368, %v1378
        %s1383 = sadd.s32 %s377, 5
        %s1384 = sld [smem:[#allocation2 + %s1383]]
        %s1385 = sshra.s32 %s1383, 7
        %s1386 = sand.u32 %s1383, 127
        %s1387 = sadd.s32 %s1385, 1
        %s1388 = smul.u32 %s1387, 128
        %s1389 = sshra.s32 %s1383, 7
        %s1390 = sand.u32 %s1383, 127
        %s1391 = sadd.s32 %s1388, %s1390
        %s1392 = sld [smem:[#allocation2 + %s1391]]
        %s1393 = sadd.s32 %s1385, 2
        %s1394 = smul.u32 %s1393, 128
        %s1395 = sadd.s32 %s1394, %s1390
        %s1396 = sld [smem:[#allocation2 + %s1395]]
        %v1397 = vpack.c.bf16 %v1380, %v1379
        %v1398 = vpack.c.bf16 %v1382, %v1381
        %1399 = vmatprep.subr.bf16.mxu0 0
        %1400 = vmatpush1.bf16.msra.mxu0 %v432
        %1401 = vmatprep.subr.bf16.mxu0 0
        %1402 = vmatpush1.bf16.msra.mxu0 %v431
        %1403 = vmatprep.subr.bf16.mxu0 0
        %1404 = vmatpush1.bf16.msra.mxu0 %v430
        %1405 = vmatprep.subr.bf16.mxu0 0
        %1406 = vmatpush1.bf16.msra.mxu0 %v429
        %1407 = vmatprep.subr.bf16.mxu0 0
        %1408 = vmatpush1.bf16.msra.mxu0 %v428
        %1409 = vmatprep.subr.bf16.mxu0 0
        %1410 = vmatpush1.bf16.msra.mxu0 %v427
        %1411 = vmatprep.subr.bf16.mxu0 0
        %1412 = vmatpush1.bf16.msra.mxu0 %v426
        %1413 = vmatprep.subr.bf16.mxu0 0
        %1414 = vmatpush1.bf16.msra.mxu0 %v425
        %1415 = vmatprep.subr.bf16.mxu0 0
        %1416 = vmatpush2.bf16.msra.mxu0 0
        %1417 = vmatprep.subr.bf16.mxu0 0
        %1418 = vmatpush2.bf16.msra.mxu0 0
        %1419 = vmatprep.subr.bf16.mxu0 0
        %1420 = vmatpush2.bf16.msra.mxu0 0
        %1421 = vmatprep.subr.bf16.mxu0 0
        %1422 = vmatpush2.bf16.msra.mxu0 0
        %1423 = vmatprep.subr.bf16.mxu0 0
        %1424 = vmatpush2.bf16.msra.mxu0 0
        %1425 = vmatprep.subr.bf16.mxu0 0
        %1426 = vmatpush2.bf16.msra.mxu0 0
        %1427 = vmatprep.subr.bf16.mxu0 0
        %1428 = vmatpush2.bf16.msra.mxu0 0
        %1429 = vmatprep.subr.bf16.mxu0 0
        %1430 = vmatpush2.bf16.msra.mxu0 0
        %1431 = vmatprep.mubr.bf16.mxu0 0
        %1432 = vmatmul.mubr.bf16.gmra.mxu0 %v1397
        %v1433 = vpop.f32.mrf.mxu0
        %v1434 = vadd.f32 %v369, %v1433
        %v1435 = vpop.f32.mrf.mxu0
        %v1436 = vpop.f32.mrf.mxu0
        %v1437 = vadd.f32 %v370, %v1436
        %v1438 = vpop.f32.mrf.mxu0
        %1439 = vmatprep.mubr.bf16.mxu0 0
        %1440 = vmatmul.mubr.bf16.gmra.mxu0 %v1398
        %v1441 = vpop.f32.mrf.mxu0
        %v1442 = vadd.f32 %v371, %v1441
        %v1443 = vpop.f32.mrf.mxu0
        %v1444 = vpop.f32.mrf.mxu0
        %v1445 = vadd.f32 %v372, %v1444
        %v1446 = vpop.f32.mrf.mxu0
        %1447 = vdwg.mxu0
        %v1448 = vld [vmem:[%s322 + $0x5] sm:$0x1]
        %v1449 = vlaneseq
        %v1450 = vshrl.u32 %v1449, 7
        %v1451 = vsub.s32 0, %v1450
        %v1452 = vrot.slane %v1448, %v1451
        %v1453 = vadd.f32 %v1434, %v1452
        %v1454 = vadd.f32 %v1437, %v1452
        %v1455 = vadd.f32 %v1442, %v1452
        %v1456 = vadd.f32 %v1445, %v1452
        %v1457 = vxor.u32 %v1453, 2147483648
        %v1458 = vxor.u32 %v1454, 2147483648
        %v1459 = vxor.u32 %v1455, 2147483648
        %v1460 = vxor.u32 %v1456, 2147483648
        %v1461 = vmul.f32 %v1457, 1.442695
        %v1462 = vpow.pop %v1461
        %v1463 = vmul.f32 %v1458, 1.442695
        %v1464 = vpow.pop %v1463
        %v1465 = vmul.f32 %v1459, 1.442695
        %v1466 = vpow.pop %v1465
        %v1467 = vmul.f32 %v1460, 1.442695
        %v1468 = vpow.pop %v1467
        %v1469 = vadd.f32 %v1462, 1.0
        %v1470 = vadd.f32 %v1464, 1.0
        %v1471 = vadd.f32 %v1466, 1.0
        %v1472 = vadd.f32 %v1468, 1.0
        %v1473 = vrcp.pop %v1469
        %v1474 = vmul.f32 1.0, %v1473
        %v1475 = vrcp.pop %v1470
        %v1476 = vmul.f32 1.0, %v1475
        %v1477 = vrcp.pop %v1471
        %v1478 = vmul.f32 1.0, %v1477
        %v1479 = vrcp.pop %v1472
        %v1480 = vmul.f32 1.0, %v1479
        %v1481 = vmul.f32 %v1453, %v1474
        %v1482 = vmul.f32 %v1454, %v1476
        %v1483 = vmul.f32 %v1455, %v1478
        %v1484 = vmul.f32 %v1456, %v1480
        %v1485 = vpack.c.bf16 %v1482, %v1481
        %v1486 = vpack.c.bf16 %v1484, %v1483
        %1487 = vmatprep.subr.bf16.mxu0 0
        %1488 = vmatpush1.bf16.msra.mxu0 %v574
        %1489 = vmatprep.subr.bf16.mxu0 0
        %1490 = vmatpush1.bf16.msra.mxu0 %v573
        %1491 = vmatprep.subr.bf16.mxu0 0
        %1492 = vmatpush1.bf16.msra.mxu0 %v572
        %1493 = vmatprep.subr.bf16.mxu0 0
        %1494 = vmatpush1.bf16.msra.mxu0 %v571
        %1495 = vmatprep.subr.bf16.mxu0 0
        %1496 = vmatpush1.bf16.msra.mxu0 %v570
        %1497 = vmatprep.subr.bf16.mxu0 0
        %1498 = vmatpush1.bf16.msra.mxu0 %v569
        %1499 = vmatprep.subr.bf16.mxu0 0
        %1500 = vmatpush1.bf16.msra.mxu0 %v568
        %1501 = vmatprep.subr.bf16.mxu0 0
        %1502 = vmatpush1.bf16.msra.mxu0 %v567
        %1503 = vmatprep.subr.bf16.mxu0 0
        %1504 = vmatpush2.bf16.msra.mxu0 0
        %1505 = vmatprep.subr.bf16.mxu0 0
        %1506 = vmatpush2.bf16.msra.mxu0 0
        %1507 = vmatprep.subr.bf16.mxu0 0
        %1508 = vmatpush2.bf16.msra.mxu0 0
        %1509 = vmatprep.subr.bf16.mxu0 0
        %1510 = vmatpush2.bf16.msra.mxu0 0
        %1511 = vmatprep.subr.bf16.mxu0 0
        %1512 = vmatpush2.bf16.msra.mxu0 0
        %1513 = vmatprep.subr.bf16.mxu0 0
        %1514 = vmatpush2.bf16.msra.mxu0 0
        %1515 = vmatprep.subr.bf16.mxu0 0
        %1516 = vmatpush2.bf16.msra.mxu0 0
        %1517 = vmatprep.subr.bf16.mxu0 0
        %1518 = vmatpush2.bf16.msra.mxu0 0
        %1519 = vmatprep.mubr.bf16.mxu0 0
        %1520 = vmatmul.mubr.bf16.gmra.mxu0 %v1485
        %v1521 = vpop.f32.mrf.mxu0
        %v1522 = vadd.f32 %v533, %v1521
        %v1523 = vpop.f32.mrf.mxu0
        %v1524 = vpop.f32.mrf.mxu0
        %v1525 = vadd.f32 %v533, %v1524
        %v1526 = vpop.f32.mrf.mxu0
        %1527 = vmatprep.mubr.bf16.mxu0 0
        %1528 = vmatmul.mubr.bf16.gmra.mxu0 %v1486
        %v1529 = vpop.f32.mrf.mxu0
        %v1530 = vadd.f32 %v533, %v1529
        %v1531 = vpop.f32.mrf.mxu0
        %v1532 = vpop.f32.mrf.mxu0
        %v1533 = vadd.f32 %v533, %v1532
        %v1534 = vpop.f32.mrf.mxu0
        %1535 = vdwg.mxu0
        %v1536 = vstv %s1392
        %v1537 = vmul.f32 %v1536, %v1522
        %v1538 = vmul.f32 %v1536, %v1525
        %v1539 = vmul.f32 %v1536, %v1530
        %v1540 = vmul.f32 %v1536, %v1533
        %v1541 = vsub.f32 %v1379, %v1537
        %v1542 = vsub.f32 %v1380, %v1538
        %v1543 = vsub.f32 %v1381, %v1539
        %v1544 = vsub.f32 %v1382, %v1540
        %v1545 = vstv %s1384
        %v1546 = vmul.f32 %v1545, %v1541
        %v1547 = vmul.f32 %v1545, %v1542
        %v1548 = vmul.f32 %v1545, %v1543
        %v1549 = vmul.f32 %v1545, %v1544
        %s1550 = scalar_lea.vmem %s318, 160
        %v1551 = vld [vmem:[%s1550] sm:$0xff]
        %v1552 = vld [vmem:[%s1550 + $0x8] sm:$0xff]
        %v1553 = vld [vmem:[%s1550 + $0x10] sm:$0xff]
        %v1554 = vld [vmem:[%s1550 + $0x18] sm:$0xff]
        %v1555 = vstv %s1396
        %v1556 = vmul.f32 %v1555, %v1551
        %v1557 = vmul.f32 %v1555, %v1552
        %v1558 = vmul.f32 %v1555, %v1553
        %v1559 = vmul.f32 %v1555, %v1554
        %v1560 = vadd.f32 %v1546, %v1556
        %v1561 = vadd.f32 %v1547, %v1557
        %v1562 = vadd.f32 %v1548, %v1558
        %v1563 = vadd.f32 %v1549, %v1559
        %s1564 = sadd.s32 %s377, 6
        %s1565 = sld [smem:[#allocation2 + %s1564]]
        %s1566 = sshra.s32 %s1564, 7
        %s1567 = sand.u32 %s1564, 127
        %s1568 = sadd.s32 %s1566, 1
        %s1569 = smul.u32 %s1568, 128
        %s1570 = sshra.s32 %s1564, 7
        %s1571 = sand.u32 %s1564, 127
        %s1572 = sadd.s32 %s1569, %s1571
        %s1573 = sld [smem:[#allocation2 + %s1572]]
        %s1574 = sadd.s32 %s1566, 2
        %s1575 = smul.u32 %s1574, 128
        %s1576 = sadd.s32 %s1575, %s1571
        %s1577 = sld [smem:[#allocation2 + %s1576]]
        %v1578 = vpack.c.bf16 %v1561, %v1560
        %v1579 = vpack.c.bf16 %v1563, %v1562
        %1580 = vmatprep.subr.bf16.mxu0 0
        %1581 = vmatpush1.bf16.msra.mxu0 %v432
        %1582 = vmatprep.subr.bf16.mxu0 0
        %1583 = vmatpush1.bf16.msra.mxu0 %v431
        %1584 = vmatprep.subr.bf16.mxu0 0
        %1585 = vmatpush1.bf16.msra.mxu0 %v430
        %1586 = vmatprep.subr.bf16.mxu0 0
        %1587 = vmatpush1.bf16.msra.mxu0 %v429
        %1588 = vmatprep.subr.bf16.mxu0 0
        %1589 = vmatpush1.bf16.msra.mxu0 %v428
        %1590 = vmatprep.subr.bf16.mxu0 0
        %1591 = vmatpush1.bf16.msra.mxu0 %v427
        %1592 = vmatprep.subr.bf16.mxu0 0
        %1593 = vmatpush1.bf16.msra.mxu0 %v426
        %1594 = vmatprep.subr.bf16.mxu0 0
        %1595 = vmatpush1.bf16.msra.mxu0 %v425
        %1596 = vmatprep.subr.bf16.mxu0 0
        %1597 = vmatpush2.bf16.msra.mxu0 0
        %1598 = vmatprep.subr.bf16.mxu0 0
        %1599 = vmatpush2.bf16.msra.mxu0 0
        %1600 = vmatprep.subr.bf16.mxu0 0
        %1601 = vmatpush2.bf16.msra.mxu0 0
        %1602 = vmatprep.subr.bf16.mxu0 0
        %1603 = vmatpush2.bf16.msra.mxu0 0
        %1604 = vmatprep.subr.bf16.mxu0 0
        %1605 = vmatpush2.bf16.msra.mxu0 0
        %1606 = vmatprep.subr.bf16.mxu0 0
        %1607 = vmatpush2.bf16.msra.mxu0 0
        %1608 = vmatprep.subr.bf16.mxu0 0
        %1609 = vmatpush2.bf16.msra.mxu0 0
        %1610 = vmatprep.subr.bf16.mxu0 0
        %1611 = vmatpush2.bf16.msra.mxu0 0
        %1612 = vmatprep.mubr.bf16.mxu0 0
        %1613 = vmatmul.mubr.bf16.gmra.mxu0 %v1578
        %v1614 = vpop.f32.mrf.mxu0
        %v1615 = vadd.f32 %v369, %v1614
        %v1616 = vpop.f32.mrf.mxu0
        %v1617 = vpop.f32.mrf.mxu0
        %v1618 = vadd.f32 %v370, %v1617
        %v1619 = vpop.f32.mrf.mxu0
        %1620 = vmatprep.mubr.bf16.mxu0 0
        %1621 = vmatmul.mubr.bf16.gmra.mxu0 %v1579
        %v1622 = vpop.f32.mrf.mxu0
        %v1623 = vadd.f32 %v371, %v1622
        %v1624 = vpop.f32.mrf.mxu0
        %v1625 = vpop.f32.mrf.mxu0
        %v1626 = vadd.f32 %v372, %v1625
        %v1627 = vpop.f32.mrf.mxu0
        %1628 = vdwg.mxu0
        %v1629 = vld [vmem:[%s322 + $0x6] sm:$0x1]
        %v1630 = vlaneseq
        %v1631 = vshrl.u32 %v1630, 7
        %v1632 = vsub.s32 0, %v1631
        %v1633 = vrot.slane %v1629, %v1632
        %v1634 = vadd.f32 %v1615, %v1633
        %v1635 = vadd.f32 %v1618, %v1633
        %v1636 = vadd.f32 %v1623, %v1633
        %v1637 = vadd.f32 %v1626, %v1633
        %v1638 = vxor.u32 %v1634, 2147483648
        %v1639 = vxor.u32 %v1635, 2147483648
        %v1640 = vxor.u32 %v1636, 2147483648
        %v1641 = vxor.u32 %v1637, 2147483648
        %v1642 = vmul.f32 %v1638, 1.442695
        %v1643 = vpow.pop %v1642
        %v1644 = vmul.f32 %v1639, 1.442695
        %v1645 = vpow.pop %v1644
        %v1646 = vmul.f32 %v1640, 1.442695
        %v1647 = vpow.pop %v1646
        %v1648 = vmul.f32 %v1641, 1.442695
        %v1649 = vpow.pop %v1648
        %v1650 = vadd.f32 %v1643, 1.0
        %v1651 = vadd.f32 %v1645, 1.0
        %v1652 = vadd.f32 %v1647, 1.0
        %v1653 = vadd.f32 %v1649, 1.0
        %v1654 = vrcp.pop %v1650
        %v1655 = vmul.f32 1.0, %v1654
        %v1656 = vrcp.pop %v1651
        %v1657 = vmul.f32 1.0, %v1656
        %v1658 = vrcp.pop %v1652
        %v1659 = vmul.f32 1.0, %v1658
        %v1660 = vrcp.pop %v1653
        %v1661 = vmul.f32 1.0, %v1660
        %v1662 = vmul.f32 %v1634, %v1655
        %v1663 = vmul.f32 %v1635, %v1657
        %v1664 = vmul.f32 %v1636, %v1659
        %v1665 = vmul.f32 %v1637, %v1661
        %v1666 = vpack.c.bf16 %v1663, %v1662
        %v1667 = vpack.c.bf16 %v1665, %v1664
        %1668 = vmatprep.subr.bf16.mxu0 0
        %1669 = vmatpush1.bf16.msra.mxu0 %v574
        %1670 = vmatprep.subr.bf16.mxu0 0
        %1671 = vmatpush1.bf16.msra.mxu0 %v573
        %1672 = vmatprep.subr.bf16.mxu0 0
        %1673 = vmatpush1.bf16.msra.mxu0 %v572
        %1674 = vmatprep.subr.bf16.mxu0 0
        %1675 = vmatpush1.bf16.msra.mxu0 %v571
        %1676 = vmatprep.subr.bf16.mxu0 0
        %1677 = vmatpush1.bf16.msra.mxu0 %v570
        %1678 = vmatprep.subr.bf16.mxu0 0
        %1679 = vmatpush1.bf16.msra.mxu0 %v569
        %1680 = vmatprep.subr.bf16.mxu0 0
        %1681 = vmatpush1.bf16.msra.mxu0 %v568
        %1682 = vmatprep.subr.bf16.mxu0 0
        %1683 = vmatpush1.bf16.msra.mxu0 %v567
        %1684 = vmatprep.subr.bf16.mxu0 0
        %1685 = vmatpush2.bf16.msra.mxu0 0
        %1686 = vmatprep.subr.bf16.mxu0 0
        %1687 = vmatpush2.bf16.msra.mxu0 0
        %1688 = vmatprep.subr.bf16.mxu0 0
        %1689 = vmatpush2.bf16.msra.mxu0 0
        %1690 = vmatprep.subr.bf16.mxu0 0
        %1691 = vmatpush2.bf16.msra.mxu0 0
        %1692 = vmatprep.subr.bf16.mxu0 0
        %1693 = vmatpush2.bf16.msra.mxu0 0
        %1694 = vmatprep.subr.bf16.mxu0 0
        %1695 = vmatpush2.bf16.msra.mxu0 0
        %1696 = vmatprep.subr.bf16.mxu0 0
        %1697 = vmatpush2.bf16.msra.mxu0 0
        %1698 = vmatprep.subr.bf16.mxu0 0
        %1699 = vmatpush2.bf16.msra.mxu0 0
        %1700 = vmatprep.mubr.bf16.mxu0 0
        %1701 = vmatmul.mubr.bf16.gmra.mxu0 %v1666
        %v1702 = vpop.f32.mrf.mxu0
        %v1703 = vadd.f32 %v533, %v1702
        %v1704 = vpop.f32.mrf.mxu0
        %v1705 = vpop.f32.mrf.mxu0
        %v1706 = vadd.f32 %v533, %v1705
        %v1707 = vpop.f32.mrf.mxu0
        %1708 = vmatprep.mubr.bf16.mxu0 0
        %1709 = vmatmul.mubr.bf16.gmra.mxu0 %v1667
        %v1710 = vpop.f32.mrf.mxu0
        %v1711 = vadd.f32 %v533, %v1710
        %v1712 = vpop.f32.mrf.mxu0
        %v1713 = vpop.f32.mrf.mxu0
        %v1714 = vadd.f32 %v533, %v1713
        %v1715 = vpop.f32.mrf.mxu0
        %1716 = vdwg.mxu0
        %v1717 = vstv %s1573
        %v1718 = vmul.f32 %v1717, %v1703
        %v1719 = vmul.f32 %v1717, %v1706
        %v1720 = vmul.f32 %v1717, %v1711
        %v1721 = vmul.f32 %v1717, %v1714
        %v1722 = vsub.f32 %v1560, %v1718
        %v1723 = vsub.f32 %v1561, %v1719
        %v1724 = vsub.f32 %v1562, %v1720
        %v1725 = vsub.f32 %v1563, %v1721
        %v1726 = vstv %s1565
        %v1727 = vmul.f32 %v1726, %v1722
        %v1728 = vmul.f32 %v1726, %v1723
        %v1729 = vmul.f32 %v1726, %v1724
        %v1730 = vmul.f32 %v1726, %v1725
        %s1731 = scalar_lea.vmem %s318, 192
        %v1732 = vld [vmem:[%s1731] sm:$0xff]
        %v1733 = vld [vmem:[%s1731 + $0x8] sm:$0xff]
        %v1734 = vld [vmem:[%s1731 + $0x10] sm:$0xff]
        %v1735 = vld [vmem:[%s1731 + $0x18] sm:$0xff]
        %v1736 = vstv %s1577
        %v1737 = vmul.f32 %v1736, %v1732
        %v1738 = vmul.f32 %v1736, %v1733
        %v1739 = vmul.f32 %v1736, %v1734
        %v1740 = vmul.f32 %v1736, %v1735
        %v1741 = vadd.f32 %v1727, %v1737
        %v1742 = vadd.f32 %v1728, %v1738
        %v1743 = vadd.f32 %v1729, %v1739
        %v1744 = vadd.f32 %v1730, %v1740
        %s1745 = sadd.s32 %s377, 7
        %s1746 = sld [smem:[#allocation2 + %s1745]]
        %s1747 = sshra.s32 %s1745, 7
        %s1748 = sand.u32 %s1745, 127
        %s1749 = sadd.s32 %s1747, 1
        %s1750 = smul.u32 %s1749, 128
        %s1751 = sshra.s32 %s1745, 7
        %s1752 = sand.u32 %s1745, 127
        %s1753 = sadd.s32 %s1750, %s1752
        %s1754 = sld [smem:[#allocation2 + %s1753]]
        %s1755 = sadd.s32 %s1747, 2
        %s1756 = smul.u32 %s1755, 128
        %s1757 = sadd.s32 %s1756, %s1752
        %s1758 = sld [smem:[#allocation2 + %s1757]]
        %v1759 = vpack.c.bf16 %v1742, %v1741
        %v1760 = vpack.c.bf16 %v1744, %v1743
        %1761 = vmatprep.subr.bf16.mxu0 0
        %1762 = vmatpush1.bf16.msra.mxu0 %v432
        %1763 = vmatprep.subr.bf16.mxu0 0
        %1764 = vmatpush1.bf16.msra.mxu0 %v431
        %1765 = vmatprep.subr.bf16.mxu0 0
        %1766 = vmatpush1.bf16.msra.mxu0 %v430
        %1767 = vmatprep.subr.bf16.mxu0 0
        %1768 = vmatpush1.bf16.msra.mxu0 %v429
        %1769 = vmatprep.subr.bf16.mxu0 0
        %1770 = vmatpush1.bf16.msra.mxu0 %v428
        %1771 = vmatprep.subr.bf16.mxu0 0
        %1772 = vmatpush1.bf16.msra.mxu0 %v427
        %1773 = vmatprep.subr.bf16.mxu0 0
        %1774 = vmatpush1.bf16.msra.mxu0 %v426
        %1775 = vmatprep.subr.bf16.mxu0 0
        %1776 = vmatpush1.bf16.msra.mxu0 %v425
        %1777 = vmatprep.subr.bf16.mxu0 0
        %1778 = vmatpush2.bf16.msra.mxu0 0
        %1779 = vmatprep.subr.bf16.mxu0 0
        %1780 = vmatpush2.bf16.msra.mxu0 0
        %1781 = vmatprep.subr.bf16.mxu0 0
        %1782 = vmatpush2.bf16.msra.mxu0 0
        %1783 = vmatprep.subr.bf16.mxu0 0
        %1784 = vmatpush2.bf16.msra.mxu0 0
        %1785 = vmatprep.subr.bf16.mxu0 0
        %1786 = vmatpush2.bf16.msra.mxu0 0
        %1787 = vmatprep.subr.bf16.mxu0 0
        %1788 = vmatpush2.bf16.msra.mxu0 0
        %1789 = vmatprep.subr.bf16.mxu0 0
        %1790 = vmatpush2.bf16.msra.mxu0 0
        %1791 = vmatprep.subr.bf16.mxu0 0
        %1792 = vmatpush2.bf16.msra.mxu0 0
        %1793 = vmatprep.mubr.bf16.mxu0 0
        %1794 = vmatmul.mubr.bf16.gmra.mxu0 %v1759
        %v1795 = vpop.f32.mrf.mxu0
        %v1796 = vadd.f32 %v369, %v1795
        %v1797 = vpop.f32.mrf.mxu0
        %v1798 = vpop.f32.mrf.mxu0
        %v1799 = vadd.f32 %v370, %v1798
        %v1800 = vpop.f32.mrf.mxu0
        %1801 = vmatprep.mubr.bf16.mxu0 0
        %1802 = vmatmul.mubr.bf16.gmra.mxu0 %v1760
        %v1803 = vpop.f32.mrf.mxu0
        %v1804 = vadd.f32 %v371, %v1803
        %v1805 = vpop.f32.mrf.mxu0
        %v1806 = vpop.f32.mrf.mxu0
        %v1807 = vadd.f32 %v372, %v1806
        %v1808 = vpop.f32.mrf.mxu0
        %1809 = vdwg.mxu0
        %v1810 = vld [vmem:[%s322 + $0x7] sm:$0x1]
        %v1811 = vlaneseq
        %v1812 = vshrl.u32 %v1811, 7
        %v1813 = vsub.s32 0, %v1812
        %v1814 = vrot.slane %v1810, %v1813
        %v1815 = vadd.f32 %v1796, %v1814
        %v1816 = vadd.f32 %v1799, %v1814
        %v1817 = vadd.f32 %v1804, %v1814
        %v1818 = vadd.f32 %v1807, %v1814
        %v1819 = vxor.u32 %v1815, 2147483648
        %v1820 = vxor.u32 %v1816, 2147483648
        %v1821 = vxor.u32 %v1817, 2147483648
        %v1822 = vxor.u32 %v1818, 2147483648
        %v1823 = vmul.f32 %v1819, 1.442695
        %v1824 = vpow.pop %v1823
        %v1825 = vmul.f32 %v1820, 1.442695
        %v1826 = vpow.pop %v1825
        %v1827 = vmul.f32 %v1821, 1.442695
        %v1828 = vpow.pop %v1827
        %v1829 = vmul.f32 %v1822, 1.442695
        %v1830 = vpow.pop %v1829
        %v1831 = vadd.f32 %v1824, 1.0
        %v1832 = vadd.f32 %v1826, 1.0
        %v1833 = vadd.f32 %v1828, 1.0
        %v1834 = vadd.f32 %v1830, 1.0
        %v1835 = vrcp.pop %v1831
        %v1836 = vmul.f32 1.0, %v1835
        %v1837 = vrcp.pop %v1832
        %v1838 = vmul.f32 1.0, %v1837
        %v1839 = vrcp.pop %v1833
        %v1840 = vmul.f32 1.0, %v1839
        %v1841 = vrcp.pop %v1834
        %v1842 = vmul.f32 1.0, %v1841
        %v1843 = vmul.f32 %v1815, %v1836
        %v1844 = vmul.f32 %v1816, %v1838
        %v1845 = vmul.f32 %v1817, %v1840
        %v1846 = vmul.f32 %v1818, %v1842
        %v1847 = vpack.c.bf16 %v1844, %v1843
        %v1848 = vpack.c.bf16 %v1846, %v1845
        %1849 = vmatprep.subr.bf16.mxu0 0
        %1850 = vmatpush1.bf16.msra.mxu0 %v574
        %1851 = vmatprep.subr.bf16.mxu0 0
        %1852 = vmatpush1.bf16.msra.mxu0 %v573
        %1853 = vmatprep.subr.bf16.mxu0 0
        %1854 = vmatpush1.bf16.msra.mxu0 %v572
        %1855 = vmatprep.subr.bf16.mxu0 0
        %1856 = vmatpush1.bf16.msra.mxu0 %v571
        %1857 = vmatprep.subr.bf16.mxu0 0
        %1858 = vmatpush1.bf16.msra.mxu0 %v570
        %1859 = vmatprep.subr.bf16.mxu0 0
        %1860 = vmatpush1.bf16.msra.mxu0 %v569
        %1861 = vmatprep.subr.bf16.mxu0 0
        %1862 = vmatpush1.bf16.msra.mxu0 %v568
        %1863 = vmatprep.subr.bf16.mxu0 0
        %1864 = vmatpush1.bf16.msra.mxu0 %v567
        %1865 = vmatprep.subr.bf16.mxu0 0
        %1866 = vmatpush2.bf16.msra.mxu0 0
        %1867 = vmatprep.subr.bf16.mxu0 0
        %1868 = vmatpush2.bf16.msra.mxu0 0
        %1869 = vmatprep.subr.bf16.mxu0 0
        %1870 = vmatpush2.bf16.msra.mxu0 0
        %1871 = vmatprep.subr.bf16.mxu0 0
        %1872 = vmatpush2.bf16.msra.mxu0 0
        %1873 = vmatprep.subr.bf16.mxu0 0
        %1874 = vmatpush2.bf16.msra.mxu0 0
        %1875 = vmatprep.subr.bf16.mxu0 0
        %1876 = vmatpush2.bf16.msra.mxu0 0
        %1877 = vmatprep.subr.bf16.mxu0 0
        %1878 = vmatpush2.bf16.msra.mxu0 0
        %1879 = vmatprep.subr.bf16.mxu0 0
        %1880 = vmatpush2.bf16.msra.mxu0 0
        %1881 = vmatprep.mubr.bf16.mxu0 0
        %1882 = vmatmul.mubr.bf16.gmra.mxu0 %v1847
        %v1883 = vpop.f32.mrf.mxu0
        %v1884 = vadd.f32 %v533, %v1883
        %v1885 = vpop.f32.mrf.mxu0
        %v1886 = vpop.f32.mrf.mxu0
        %v1887 = vadd.f32 %v533, %v1886
        %v1888 = vpop.f32.mrf.mxu0
        %1889 = vmatprep.mubr.bf16.mxu0 0
        %1890 = vmatmul.mubr.bf16.gmra.mxu0 %v1848
        %v1891 = vpop.f32.mrf.mxu0
        %v1892 = vadd.f32 %v533, %v1891
        %v1893 = vpop.f32.mrf.mxu0
        %v1894 = vpop.f32.mrf.mxu0
        %v1895 = vadd.f32 %v533, %v1894
        %v1896 = vpop.f32.mrf.mxu0
        %1897 = vdwg.mxu0
        %v1898 = vstv %s1754
        %v1899 = vmul.f32 %v1898, %v1884
        %v1900 = vmul.f32 %v1898, %v1887
        %v1901 = vmul.f32 %v1898, %v1892
        %v1902 = vmul.f32 %v1898, %v1895
        %v1903 = vsub.f32 %v1741, %v1899
        %v1904 = vsub.f32 %v1742, %v1900
        %v1905 = vsub.f32 %v1743, %v1901
        %v1906 = vsub.f32 %v1744, %v1902
        %v1907 = vstv %s1746
        %v1908 = vmul.f32 %v1907, %v1903
        %v1909 = vmul.f32 %v1907, %v1904
        %v1910 = vmul.f32 %v1907, %v1905
        %v1911 = vmul.f32 %v1907, %v1906
        %s1912 = scalar_lea.vmem %s318, 224
        %v1913 = vld [vmem:[%s1912] sm:$0xff]
        %v1914 = vld [vmem:[%s1912 + $0x8] sm:$0xff]
        %v1915 = vld [vmem:[%s1912 + $0x10] sm:$0xff]
        %v1916 = vld [vmem:[%s1912 + $0x18] sm:$0xff]
        %v1917 = vstv %s1758
        %v1918 = vmul.f32 %v1917, %v1913
        %v1919 = vmul.f32 %v1917, %v1914
        %v1920 = vmul.f32 %v1917, %v1915
        %v1921 = vmul.f32 %v1917, %v1916
        %v1922 = vadd.f32 %v1908, %v1918
        %v1923 = vadd.f32 %v1909, %v1919
        %v1924 = vadd.f32 %v1910, %v1920
        %v1925 = vadd.f32 %v1911, %v1921
        %1926 = vst [vmem:[#allocation5] sm:$0xff] %v1922
        %1927 = vst [vmem:[#allocation5 + $0x8] sm:$0xff] %v1923
        %1928 = vst [vmem:[#allocation5 + $0x10] sm:$0xff] %v1924
        %1929 = vst [vmem:[#allocation5 + $0x18] sm:$0xff] %v1925
        // Predicated region
        $region61: #{ddpm_conditional_sample.1} parent=51 // pred_check
          %p1930 = pneg %p212
        $region62: #{ddpm_conditional_sample.1} parent=51 // pred_check_branch
          %1932 = sbr.rel (%p1930) target = $region64
        $region63: #{ddpm_conditional_sample.1} parent=51 // pred_region
          %s1934 = ssub.s32 512, 512
          %1935 = vsyncadd [#allocation3], %s1934
          %s1936 = sshll.u32 [#allocation5], 4
          %s1937 = int_to_ptr.vmem [resolvable:$true] %s1936
          %1942 = dma.vmem_to_hbm [thread:$0]  %s1937, 512, %s8, [#allocation3], 128, 128, 8
        $region64: #{ddpm_conditional_sample.1} parent=51 // pred_fallthru
          _
        // Predicated region
        $region65: #{ddpm_conditional_sample.1} parent=51 // pred_check
          %p1943 = pneg %p212
        $region66: #{ddpm_conditional_sample.1} parent=51 // pred_check_branch
          %1945 = sbr.rel (%p1943) target = $region68
        $region67: #{ddpm_conditional_sample.1} parent=51 // pred_region
          %1946 = dma.done [#allocation3], 512
        $region68: #{ddpm_conditional_sample.1} parent=51 // pred_fallthru
          _
      $region52: #{ddpm_conditional_sample.1} parent=5 // pred_fallthru
        _
      %p1947 = scmp.le.s32.totalorder 2, %s16
      // Predicated region
      $region69: #{ddpm_conditional_sample.1} parent=5 // pred_check
        %p1948 = pneg %p1947
      $region70: #{ddpm_conditional_sample.1} parent=5 // pred_check_branch
        %1950 = sbr.rel (%p1948) target = $region72
      $region71: #{ddpm_conditional_sample.1} parent=5 // pred_region
        %s1951 = ssub.s32 %s16, 2
      $region72: #{ddpm_conditional_sample.1} parent=5 // pred_fallthru
        _
    $region6: #{ddpm_conditional_sample.1} parent=1 // loop_footer
      %s20 = sadd.s32 1, %s16
    $region7: #{ddpm_conditional_sample.1} parent=1 // loop_footer_branch
      %15 = sbr.rel target = $region3
    $region8: #{ddpm_conditional_sample.1} parent=1 // loop_exit
      _
    %1952 = vsyncpa [#allocation3], 1
    %s1953 = scalar_lea.sflag [#allocation3], 1
    %1954 = vsyncpa %s1953, 1
    %1955 = vsyncpa [#allocation4], 1
    %s1956 = scalar_lea.sflag [#allocation4], 1
    %1957 = vsyncpa %s1956, 1

</llo_original>
